<compile_context>
chip_gen: v6e
topology: v6e:2x2x1
jax: 0.10.0
libtpu: 0.0.40
codegen_flags: <defaults>
</compile_context>

<pallas_src>
import functools

import jax
import jax.numpy as jnp
from jax import lax
from jax.experimental import pallas as pl
from jax.experimental.pallas import tpu as pltpu


_LN_EPS = 1e-5            # torch nn.LayerNorm default
_INV_SQRT2 = 0.7071067811865476
_VMEM_LIMIT_BYTES = 64 * 1024 * 1024   # above the 16/32 MiB scoped defaults


def _gelu_exact(u):
    # torch nn.GELU() default = exact erf formulation.
    return 0.5 * u * (1.0 + lax.erf(u * _INV_SQRT2))


def _layer_norm(x, w, b):
    mu = jnp.mean(x, axis=-1, keepdims=True)
    var = jnp.mean(jnp.square(x - mu), axis=-1, keepdims=True)
    return (x - mu) * lax.rsqrt(var + _LN_EPS) * w + b


# ---------------------------------------------------------------------------
# Stage 1: per-batch attention core, all heads in one grid step.
# ---------------------------------------------------------------------------
def _attn_kernel(x_ref, ln1w_ref, ln1b_ref, wq_ref, wk_ref, wv_ref, o_ref,
                 *, scale, mm_dtype):
    x = x_ref[0].astype(jnp.float32)                                 # (N, C)
    # LayerNorm1 computed exactly once per batch row (not once per head).
    xn = _layer_norm(x,
                     ln1w_ref[0].astype(jnp.float32),
                     ln1b_ref[0].astype(jnp.float32))

    wq = wq_ref[...]                                                 # (H, C, hd)
    wk = wk_ref[...]
    wv = wv_ref[...]
    H = wq.shape[0]
    N, C = xn.shape
    wdt = wq.dtype            # bf16 weights => bf16 MXU operands, f32 accumulation

    # One broadcast (hoisted, single op) so all per-head projections are a
    # single batched dot_general each (batch dim = heads, contraction over C).
    xn_b = jnp.broadcast_to(xn.astype(wdt)[None], (H, N, C))

    # Fold the module's n_heads**-0.5 scale into q (saves an (H,N,N) VPU multiply).
    q = jnp.einsum("hnc,hcd->hnd", xn_b, wq,
                   preferred_element_type=jnp.float32) * scale        # (H, N, hd)
    k = jnp.einsum("hnc,hcd->hnd", xn_b, wk,
                   preferred_element_type=jnp.float32)                # (H, N, hd)
    v = jnp.einsum("hnc,hcd->hnd", xn_b, wv,
                   preferred_element_type=jnp.float32)                # (H, N, hd)

    # Scores: bf16 operands, f32 accumulation (standard flash-attention numerics).
    s = jnp.einsum("hnd,hmd->hnm", q.astype(mm_dtype), k.astype(mm_dtype),
                   preferred_element_type=jnp.float32)                # (H, N, N)
    s = s - jnp.max(s, axis=-1, keepdims=True)
    p = jnp.exp(s)
    denom = jnp.sum(p, axis=-1, keepdims=True)                        # (H, N, 1)

    o = jnp.einsum("hnm,hmd->hnd", p.astype(mm_dtype), v.astype(mm_dtype),
                   preferred_element_type=jnp.float32)                # (H, N, hd)
    # Normalize after the PV matmul (H*N*hd instead of H*N*N multiplies); the
    # approximate reciprocal runs on the otherwise-idle EUP slot.
    o = o * pl.reciprocal(denom, approx=True)

    # attention-softmax dropout == identity in eval mode.
    # bf16 writeback halves the stage-boundary HBM traffic.
    o_ref[0] = o.astype(o_ref.dtype)


# ---------------------------------------------------------------------------
# Stage 2: output projection + residual + LayerNorm + MLP + residual,
#          tiled over (batch, sequence-tile); weights stay VMEM-resident.
# ---------------------------------------------------------------------------
def _proj_mlp_kernel(x_ref, attn_ref, wproj_ref, ln2w_ref, ln2b_ref,
                     w1_ref, b1_ref, w2_ref, b2_ref, out_ref):
    x = x_ref[0].astype(jnp.float32)                                  # (tq, C)

    wproj = wproj_ref[...]
    attn = attn_ref[0].astype(wproj.dtype)                            # (tq, C)
    proj = jnp.dot(attn, wproj, preferred_element_type=jnp.float32)   # (tq, C)
    y = x + proj                       # residual; dropout1 == identity (eval)

    yn = _layer_norm(y,
                     ln2w_ref[0].astype(jnp.float32),
                     ln2b_ref[0].astype(jnp.float32))

    w1 = w1_ref[...]
    h1 = _gelu_exact(jnp.dot(yn.astype(w1.dtype), w1,
                             preferred_element_type=jnp.float32)
                     + b1_ref[0].astype(jnp.float32))
    # NOTE: torch MLP is Sequential(Linear, GELU, Linear, GELU) -> GELU after fc2 too.
    w2 = w2_ref[...]
    h2 = _gelu_exact(jnp.dot(h1.astype(w2.dtype), w2,
                             preferred_element_type=jnp.float32)
                     + b2_ref[0].astype(jnp.float32))

    out_ref[0] = (y + h2).astype(out_ref.dtype)   # residual; dropout2 == identity


# ---------------------------------------------------------------------------
# Wrapper
# ---------------------------------------------------------------------------
def block_forward(x, params, *, n_heads, block_n=None, use_bf16_matmul=True):
    B, N, C = x.shape
    assert C % n_heads == 0
    hd = C // n_heads
    hidden = params["w1_t"].shape[1]
    scale = n_heads ** (-0.5)          # module uses n_heads**-0.5 (not head_dim**-0.5)
    mm_dtype = jnp.bfloat16 if use_bf16_matmul else jnp.float32

    # Host-side head split of the fused QKV weight -> three (H, C, hd) slabs,
    # matching torch's reshape(b, n, 3, H, hd) column layout of qkv.weight.
    wqkv_t = params["wqkv_t"]                                    # (C, 3C)

    def _split_heads(w):                                         # (C, C) -> (H, C, hd)
        return w.reshape(C, n_heads, hd).transpose(1, 0, 2)

    wq = _split_heads(wqkv_t[:, 0 * C:1 * C])
    wk = _split_heads(wqkv_t[:, 1 * C:2 * C])
    wv = _split_heads(wqkv_t[:, 2 * C:3 * C])

    # ---- stage 1: attention core, one batch row per grid step ----------------
    attn_kernel = functools.partial(_attn_kernel, scale=scale, mm_dtype=mm_dtype)
    o = pl.pallas_call(
        attn_kernel,
        out_shape=jax.ShapeDtypeStruct((B, n_heads, N, hd), jnp.bfloat16),
        grid=(B,),
        in_specs=[
            pl.BlockSpec((1, N, C), lambda b: (b, 0, 0)),            # x
            pl.BlockSpec((1, C), lambda b: (0, 0)),                  # ln1 weight
            pl.BlockSpec((1, C), lambda b: (0, 0)),                  # ln1 bias
            pl.BlockSpec((n_heads, C, hd), lambda b: (0, 0, 0)),     # wq (resident)
            pl.BlockSpec((n_heads, C, hd), lambda b: (0, 0, 0)),     # wk (resident)
            pl.BlockSpec((n_heads, C, hd), lambda b: (0, 0, 0)),     # wv (resident)
        ],
        out_specs=pl.BlockSpec((1, n_heads, N, hd), lambda b: (b, 0, 0, 0)),
        compiler_params=pltpu.CompilerParams(
            dimension_semantics=("parallel",),
            vmem_limit_bytes=_VMEM_LIMIT_BYTES),
    )(x, params["ln1_w"], params["ln1_b"], wq, wk, wv)

    # Head merge exactly as the torch module does it:
    #     attention = attention.reshape(b, n, c)
    # on the contiguous (b, H, n, hd) tensor (no head/sequence transpose).
    # Pure metadata op in XLA; boundary traffic is bf16.
    attn = o.reshape(B, N, C)

    # ---- stage 2: projection + residual + LN2 + MLP + residual ---------------
    if block_n is None:
        block_n = N if N <= 256 else 256
    assert N % block_n == 0, "sequence length must be divisible by block_n"
    n_tiles = N // block_n

    out = pl.pallas_call(
        _proj_mlp_kernel,
        out_shape=jax.ShapeDtypeStruct((B, N, C), x.dtype),
        grid=(B, n_tiles),
        in_specs=[
            pl.BlockSpec((1, block_n, C), lambda b, s: (b, s, 0)),   # x
            pl.BlockSpec((1, block_n, C), lambda b, s: (b, s, 0)),   # attn (bf16)
            pl.BlockSpec((C, C), lambda b, s: (0, 0)),               # wproj_t (resident)
            pl.BlockSpec((1, C), lambda b, s: (0, 0)),               # ln2 weight
            pl.BlockSpec((1, C), lambda b, s: (0, 0)),               # ln2 bias
            pl.BlockSpec((C, hidden), lambda b, s: (0, 0)),          # w1_t (resident)
            pl.BlockSpec((1, hidden), lambda b, s: (0, 0)),          # b1
            pl.BlockSpec((hidden, C), lambda b, s: (0, 0)),          # w2_t (resident)
            pl.BlockSpec((1, C), lambda b, s: (0, 0)),               # b2
        ],
        out_specs=pl.BlockSpec((1, block_n, C), lambda b, s: (b, s, 0)),
        compiler_params=pltpu.CompilerParams(
            dimension_semantics=("parallel", "parallel"),
            vmem_limit_bytes=_VMEM_LIMIT_BYTES),
    )(x, attn, params["wproj_t"], params["ln2_w"], params["ln2_b"],
      params["w1_t"], params["b1"], params["w2_t"], params["b2"])

    return out


# ---------------------------------------------------------------------------
# Pure-JAX reference mirroring the PyTorch forward line by line (eval mode).
# ---------------------------------------------------------------------------
def block_reference(x, params, *, n_heads):
    B, N, C = x.shape
    hd = C // n_heads
    scale = n_heads ** (-0.5)

    xn = _layer_norm(x, params["ln1_w"][0], params["ln1_b"][0])
    qkv = xn @ params["wqkv_t"]                                   # (B, N, 3C)
    qkv = qkv.reshape(B, N, 3, n_heads, hd).transpose(2, 0, 3, 1, 4)
    q, k, v = qkv[0], qkv[1], qkv[2]                              # (B, H, N, hd)
    att = jnp.einsum("bhnd,bhmd->bhnm", q, k) * scale
    att = jax.nn.softmax(att, axis=-1)
    o = jnp.einsum("bhnm,bhmd->bhnd", att, v)                     # (B, H, N, hd)
    attn = o.reshape(B, N, C)      # torch: attention.reshape(b, n, c) (no transpose)
    y = x + attn @ params["wproj_t"]

    yn = _layer_norm(y, params["ln2_w"][0], params["ln2_b"][0])
    h1 = _gelu_exact(yn @ params["w1_t"] + params["b1"][0])
    h2 = _gelu_exact(h1 @ params["w2_t"] + params["b2"][0])
    return y + h2


if __name__ == "__main__":
    embed_dim, n_heads, mlp_ratio = 16, 4, 4
    B, N, C = 2, 8, embed_dim
    hidden = embed_dim * mlp_ratio

    key = jax.random.PRNGKey(0)
    keys = jax.random.split(key, 11)

    # torch Linear weights are (out, in); we store the transposes (in, out).
    params = {
        "ln1_w": 1.0 + 0.1 * jax.random.normal(keys[0], (1, C), jnp.float32),
        "ln1_b": 0.1 * jax.random.normal(keys[1], (1, C), jnp.float32),
        "wqkv_t": 0.2 * jax.random.normal(keys[2], (C, 3 * C), jnp.float32),
        "wproj_t": 0.2 * jax.random.normal(keys[3], (C, C), jnp.float32),
        "ln2_w": 1.0 + 0.1 * jax.random.normal(keys[4], (1, C), jnp.float32),
        "ln2_b": 0.1 * jax.random.normal(keys[5], (1, C), jnp.float32),
        "w1_t": 0.2 * jax.random.normal(keys[6], (C, hidden), jnp.float32),
        "b1": 0.1 * jax.random.normal(keys[7], (1, hidden), jnp.float32),
        "w2_t": 0.2 * jax.random.normal(keys[8], (hidden, C), jnp.float32),
        "b2": 0.1 * jax.random.normal(keys[9], (1, C), jnp.float32),
    }

    x = jax.random.normal(keys[10], (B, N, C), jnp.float32)

    out = jax.block_until_ready(block_forward(x, params, n_heads=n_heads))
    ref = block_reference(x, params, n_heads=n_heads)

    assert out.shape == (B, N, C)
    # Tolerance covers the bf16 QK^T/PV operands, the bf16 stage boundary and
    # the approximate EUP reciprocal used for the softmax denominator.
    assert jnp.allclose(out, ref, atol=3e-2, rtol=3e-2), (
        "mismatch vs reference: max abs err = "
        f"{jnp.max(jnp.abs(out - ref))}")

    print("KERNEL_OK")
</pallas_src>

<mosaic_0001>
module attributes {stable_mosaic.version = 11 : i64} {
  func.func @_attn_kernel(%arg0: i32, %arg1: memref<1x8x16xf32, #tpu.memory_space<vmem>>, %arg2: memref<1x16xf32, #tpu.memory_space<vmem>>, %arg3: memref<1x16xf32, #tpu.memory_space<vmem>>, %arg4: memref<4x16x4xf32, #tpu.memory_space<vmem>>, %arg5: memref<4x16x4xf32, #tpu.memory_space<vmem>>, %arg6: memref<4x16x4xf32, #tpu.memory_space<vmem>>, %arg7: memref<1x4x8x4xbf16, #tpu.memory_space<vmem>>) attributes {dimension_semantics = [#tpu.dimension_semantics<parallel>], iteration_bounds = array<i64: 2>, scalar_prefetch = 0 : i64, scratch_operands = 0 : i64, tpu.core_type = #tpu.core_type<tc>, window_params = [{transform_indices = @transform_0, window_bounds = array<i64: 1, 8, 16>}, {pipeline_mode = #tpu.pipeline_mode<synchronous>, transform_indices = @transform_1, window_bounds = array<i64: 1, 16>}, {pipeline_mode = #tpu.pipeline_mode<synchronous>, transform_indices = @transform_2, window_bounds = array<i64: 1, 16>}, {pipeline_mode = #tpu.pipeline_mode<synchronous>, transform_indices = @transform_3, window_bounds = array<i64: 4, 16, 4>}, {pipeline_mode = #tpu.pipeline_mode<synchronous>, transform_indices = @transform_4, window_bounds = array<i64: 4, 16, 4>}, {pipeline_mode = #tpu.pipeline_mode<synchronous>, transform_indices = @transform_5, window_bounds = array<i64: 4, 16, 4>}, {transform_indices = @transform_6, window_bounds = array<i64: 1, 4, 8, 4>}]} {
    %c0 = arith.constant 0 : index
    %c0_0 = arith.constant 0 : index
    %c0_1 = arith.constant 0 : index
    %0 = vector.load %arg1[%c0, %c0_0, %c0_1] : memref<1x8x16xf32, #tpu.memory_space<vmem>>, vector<1x8x16xf32>
    %1 = vector.shape_cast %0 : vector<1x8x16xf32> to vector<8x16xf32>
    %c0_2 = arith.constant 0 : index
    %c0_3 = arith.constant 0 : index
    %2 = vector.load %arg2[%c0_2, %c0_3] : memref<1x16xf32, #tpu.memory_space<vmem>>, vector<1x16xf32>
    %3 = vector.shape_cast %2 : vector<1x16xf32> to vector<16xf32>
    %c0_4 = arith.constant 0 : index
    %c0_5 = arith.constant 0 : index
    %4 = vector.load %arg3[%c0_4, %c0_5] : memref<1x16xf32, #tpu.memory_space<vmem>>, vector<1x16xf32>
    %5 = vector.shape_cast %4 : vector<1x16xf32> to vector<16xf32>
    %cst = arith.constant dense<0.000000e+00> : vector<8xf32>
    %6 = vector.multi_reduction <add>, %1, %cst [1] : vector<8x16xf32> to vector<8xf32>
    %7 = vector.shape_cast %6 : vector<8xf32> to vector<8x1xf32>
    %cst_6 = arith.constant 1.600000e+01 : f32
    %8 = vector.broadcast %cst_6 : f32 to vector<8x1xf32>
    %9 = arith.divf %7, %8 : vector<8x1xf32>
    %10 = vector.broadcast %9 : vector<8x1xf32> to vector<8x16xf32>
    %11 = arith.subf %1, %10 : vector<8x16xf32>
    %12 = arith.mulf %11, %11 : vector<8x16xf32>
    %cst_7 = arith.constant dense<0.000000e+00> : vector<8xf32>
    %13 = vector.multi_reduction <add>, %12, %cst_7 [1] : vector<8x16xf32> to vector<8xf32>
    %14 = vector.shape_cast %13 : vector<8xf32> to vector<8x1xf32>
    %cst_8 = arith.constant 1.600000e+01 : f32
    %15 = vector.broadcast %cst_8 : f32 to vector<8x1xf32>
    %16 = arith.divf %14, %15 : vector<8x1xf32>
    %17 = vector.broadcast %9 : vector<8x1xf32> to vector<8x16xf32>
    %18 = arith.subf %1, %17 : vector<8x16xf32>
    %cst_9 = arith.constant 9.99999974E-6 : f32
    %19 = vector.broadcast %cst_9 : f32 to vector<8x1xf32>
    %20 = arith.addf %16, %19 : vector<8x1xf32>
    %21 = math.rsqrt %20 : vector<8x1xf32>
    %22 = vector.broadcast %21 : vector<8x1xf32> to vector<8x16xf32>
    %23 = arith.mulf %18, %22 : vector<8x16xf32>
    %24 = vector.shape_cast %3 : vector<16xf32> to vector<1x16xf32>
    %25 = vector.broadcast %24 : vector<1x16xf32> to vector<8x16xf32>
    %26 = arith.mulf %23, %25 : vector<8x16xf32>
    %27 = vector.shape_cast %5 : vector<16xf32> to vector<1x16xf32>
    %28 = vector.broadcast %27 : vector<1x16xf32> to vector<8x16xf32>
    %29 = arith.addf %26, %28 : vector<8x16xf32>
    %c0_10 = arith.constant 0 : index
    %c0_11 = arith.constant 0 : index
    %c0_12 = arith.constant 0 : index
    %30 = vector.load %arg4[%c0_10, %c0_11, %c0_12] : memref<4x16x4xf32, #tpu.memory_space<vmem>>, vector<4x16x4xf32>
    %c0_13 = arith.constant 0 : index
    %c0_14 = arith.constant 0 : index
    %c0_15 = arith.constant 0 : index
    %31 = vector.load %arg5[%c0_13, %c0_14, %c0_15] : memref<4x16x4xf32, #tpu.memory_space<vmem>>, vector<4x16x4xf32>
    %c0_16 = arith.constant 0 : index
    %c0_17 = arith.constant 0 : index
    %c0_18 = arith.constant 0 : index
    %32 = vector.load %arg6[%c0_16, %c0_17, %c0_18] : memref<4x16x4xf32, #tpu.memory_space<vmem>>, vector<4x16x4xf32>
    %33 = vector.shape_cast %29 : vector<8x16xf32> to vector<1x8x16xf32>
    %34 = vector.shape_cast %33 : vector<1x8x16xf32> to vector<1x8x16xf32>
    %35 = vector.broadcast %34 : vector<1x8x16xf32> to vector<4x8x16xf32>
    "tpu.trace_start"() <{level = 10 : i32, message = "hnc,hcd->hnd"}> : () -> ()
    %cst_19 = arith.constant dense<0.000000e+00> : vector<4x8x4xf32>
    %36 = tpu.matmul %35, %30, %cst_19 {dimension_numbers = #tpu.dot_dimension_numbers<[2], [1], [1], [2], [0, 0, 0, 1, 1, 2], [0], [0]>} : vector<4x8x16xf32>, vector<4x16x4xf32>, vector<4x8x4xf32> -> vector<4x8x4xf32>
    "tpu.trace_stop"() : () -> ()
    %cst_20 = arith.constant 5.000000e-01 : f32
    %37 = vector.broadcast %cst_20 : f32 to vector<4x8x4xf32>
    %38 = arith.mulf %36, %37 : vector<4x8x4xf32>
    "tpu.trace_start"() <{level = 10 : i32, message = "hnc,hcd->hnd"}> : () -> ()
    %cst_21 = arith.constant dense<0.000000e+00> : vector<4x8x4xf32>
    %39 = tpu.matmul %35, %31, %cst_21 {dimension_numbers = #tpu.dot_dimension_numbers<[2], [1], [1], [2], [0, 0, 0, 1, 1, 2], [0], [0]>} : vector<4x8x16xf32>, vector<4x16x4xf32>, vector<4x8x4xf32> -> vector<4x8x4xf32>
    %cst_22 = arith.constant dense<0.000000e+00> : vector<4x8x4xf32>
    %40 = tpu.matmul %35, %32, %cst_22 {dimension_numbers = #tpu.dot_dimension_numbers<[2], [1], [1], [2], [0, 0, 0, 1, 1, 2], [0], [0]>} : vector<4x8x16xf32>, vector<4x16x4xf32>, vector<4x8x4xf32> -> vector<4x8x4xf32>
    "tpu.trace_stop"() : () -> ()
    %41 = arith.truncf %38 : vector<4x8x4xf32> to vector<4x8x4xbf16>
    %42 = arith.truncf %39 : vector<4x8x4xf32> to vector<4x8x4xbf16>
    "tpu.trace_start"() <{level = 10 : i32, message = "hnd,hmd->hnm"}> : () -> ()
    %cst_23 = arith.constant dense<0.000000e+00> : vector<4x8x8xf32>
    %43 = tpu.matmul %41, %42, %cst_23 {dimension_numbers = #tpu.dot_dimension_numbers<[2], [2], [1], [1], [0, 0, 0, 1, 1, 1], [0], [0]>} : vector<4x8x4xbf16>, vector<4x8x4xbf16>, vector<4x8x8xf32> -> vector<4x8x8xf32>
    "tpu.trace_stop"() : () -> ()
    %cst_24 = arith.constant dense<0xFF800000> : vector<4x8xf32>
    %44 = vector.multi_reduction <maximumf>, %43, %cst_24 [2] : vector<4x8x8xf32> to vector<4x8xf32>
    %45 = vector.shape_cast %44 : vector<4x8xf32> to vector<4x8x1xf32>
    %46 = vector.broadcast %45 : vector<4x8x1xf32> to vector<4x8x8xf32>
    %47 = arith.subf %43, %46 : vector<4x8x8xf32>
    %48 = math.exp %47 : vector<4x8x8xf32>
    %cst_25 = arith.constant dense<0.000000e+00> : vector<4x8xf32>
    %49 = vector.multi_reduction <add>, %48, %cst_25 [2] : vector<4x8x8xf32> to vector<4x8xf32>
    %50 = vector.shape_cast %49 : vector<4x8xf32> to vector<4x8x1xf32>
    %51 = arith.truncf %48 : vector<4x8x8xf32> to vector<4x8x8xbf16>
    %52 = arith.truncf %40 : vector<4x8x4xf32> to vector<4x8x4xbf16>
    "tpu.trace_start"() <{level = 10 : i32, message = "hnm,hmd->hnd"}> : () -> ()
    %cst_26 = arith.constant dense<0.000000e+00> : vector<4x8x4xf32>
    %53 = tpu.matmul %51, %52, %cst_26 {dimension_numbers = #tpu.dot_dimension_numbers<[2], [1], [1], [2], [0, 0, 0, 1, 1, 2], [0], [0]>} : vector<4x8x8xbf16>, vector<4x8x4xbf16>, vector<4x8x4xf32> -> vector<4x8x4xf32>
    "tpu.trace_stop"() : () -> ()
    %54 = tpu.reciprocal %50 {approx = true} : vector<4x8x1xf32> -> vector<4x8x1xf32>
    %55 = vector.broadcast %54 : vector<4x8x1xf32> to vector<4x8x4xf32>
    %56 = arith.mulf %53, %55 : vector<4x8x4xf32>
    %57 = arith.truncf %56 : vector<4x8x4xf32> to vector<4x8x4xbf16>
    %c0_27 = arith.constant 0 : index
    %c0_28 = arith.constant 0 : index
    %c0_29 = arith.constant 0 : index
    %c0_30 = arith.constant 0 : index
    %58 = vector.load %arg7[%c0_27, %c0_28, %c0_29, %c0_30] : memref<1x4x8x4xbf16, #tpu.memory_space<vmem>>, vector<1x4x8x4xbf16>
    %59 = vector.shape_cast %58 : vector<1x4x8x4xbf16> to vector<4x8x4xbf16>
    %60 = vector.shape_cast %57 : vector<4x8x4xbf16> to vector<1x4x8x4xbf16>
    tpu.vector_store %arg7[%c0_27, %c0_28, %c0_29, %c0_30], %60 {strides = array<i32>} : memref<1x4x8x4xbf16, #tpu.memory_space<vmem>>, vector<1x4x8x4xbf16>,
    return
  }
  func.func @transform_0(%arg0: i32) -> (i32, i32, i32) {
    %c0_i32 = arith.constant 0 : i32
    %c0_i32_0 = arith.constant 0 : i32
    %c0_i32_1 = arith.constant 0 : i32
    return %arg0, %c0_i32, %c0_i32_0 : i32, i32, i32
  }
  func.func @transform_1(%arg0: i32) -> (i32, i32) {
    %c0_i32 = arith.constant 0 : i32
    %c0_i32_0 = arith.constant 0 : i32
    %c0_i32_1 = arith.constant 0 : i32
    return %c0_i32, %c0_i32_0 : i32, i32
  }
  func.func @transform_2(%arg0: i32) -> (i32, i32) {
    %c0_i32 = arith.constant 0 : i32
    %c0_i32_0 = arith.constant 0 : i32
    %c0_i32_1 = arith.constant 0 : i32
    return %c0_i32, %c0_i32_0 : i32, i32
  }
  func.func @transform_3(%arg0: i32) -> (i32, i32, i32) {
    %c0_i32 = arith.constant 0 : i32
    %c0_i32_0 = arith.constant 0 : i32
    %c0_i32_1 = arith.constant 0 : i32
    %c0_i32_2 = arith.constant 0 : i32
    return %c0_i32, %c0_i32_0, %c0_i32_1 : i32, i32, i32
  }
  func.func @transform_4(%arg0: i32) -> (i32, i32, i32) {
    %c0_i32 = arith.constant 0 : i32
    %c0_i32_0 = arith.constant 0 : i32
    %c0_i32_1 = arith.constant 0 : i32
    %c0_i32_2 = arith.constant 0 : i32
    return %c0_i32, %c0_i32_0, %c0_i32_1 : i32, i32, i32
  }
  func.func @transform_5(%arg0: i32) -> (i32, i32, i32) {
    %c0_i32 = arith.constant 0 : i32
    %c0_i32_0 = arith.constant 0 : i32
    %c0_i32_1 = arith.constant 0 : i32
    %c0_i32_2 = arith.constant 0 : i32
    return %c0_i32, %c0_i32_0, %c0_i32_1 : i32, i32, i32
  }
  func.func @transform_6(%arg0: i32) -> (i32, i32, i32, i32) {
    %c0_i32 = arith.constant 0 : i32
    %c0_i32_0 = arith.constant 0 : i32
    %c0_i32_1 = arith.constant 0 : i32
    %c0_i32_2 = arith.constant 0 : i32
    return %arg0, %c0_i32, %c0_i32_0, %c0_i32_1 : i32, i32, i32, i32
  }
}

</mosaic_0001>

<llo_original>
// kernel: tpu_custom_call.1
$region0: #{tpu_custom_call.1}
  #allocation0 [shape = 'u32[]', space=smem, size = 0x4, offset = 0x4, fixed_abs, tag = 'smem constant byte address 0x4 - core index']
  #allocation1 [shape = 'u32[144,128]{1,0:T(1,128)}', space=vmem, size = 0x12000, scoped, tag = 'internal scratch']
  %s0 = inlined_call_operand.vmem [shape: f32[2,8,16], index: 0, kind: input, shape index: {}]
  %s1 = inlined_call_operand.vmem [shape: f32[1,16], index: 1, kind: input, shape index: {}]
  %s2 = inlined_call_operand.vmem [shape: f32[1,16], index: 2, kind: input, shape index: {}]
  %s3 = inlined_call_operand.vmem [shape: f32[4,16,4], index: 3, kind: input, shape index: {}]
  %s4 = inlined_call_operand.vmem [shape: f32[4,16,4], index: 4, kind: input, shape index: {}]
  %s5 = inlined_call_operand.vmem [shape: f32[4,16,4], index: 5, kind: input, shape index: {}]
  %s6 = inlined_call_operand.vmem [shape: bf16[2,4,8,4], index: 6, kind: output, shape index: {}]
  %s7 = sld [smem:[#allocation0]]
  $region57: #{tpu_custom_call.1} parent=0
    _
  %s9 = ssub.s32 1, %s7
  %s10 = scalar_select 0, %s9, %s7
  loop: start=0, step=1, limit=4
  $region2: #{tpu_custom_call.1} parent=0 // loop_pre_header
    _
  $region3: #{tpu_custom_call.1} parent=0 // loop_header
    %s12 = sphi 0, %s16
    %p13 = scmp.ge.s32.totalorder %s12, 4
    %s22 = sphi 0, %s24
    %s25 = sphi 0, %s22
    %s26 = sphi 0, %s25
    %s42 = sphi 0, %s26
    %s46 = sphi 0, %s46
    %s48 = sphi 0, %s46
    %s49 = sphi 0, %s48
    %s63 = sphi 0, %s49
    %s67 = sphi 0, %s67
    %s69 = sphi 0, %s67
    %s70 = sphi 0, %s69
    %s84 = sphi 0, %s70
    %s88 = sphi 0, %s88
    %s90 = sphi 0, %s88
    %s91 = sphi 0, %s90
    %s105 = sphi 0, %s91
    %s109 = sphi 0, %s109
    %s111 = sphi 0, %s109
    %s112 = sphi 0, %s111
    %s126 = sphi 0, %s112
    %s130 = sphi 0, %s130
    %s132 = sphi 0, %s130
    %s133 = sphi 0, %s132
    %s147 = sphi 0, %s133
    %s153 = sphi 0, %s155
    %s156 = sphi 0, %s153
    %s157 = sphi 0, %s156
    %s173 = sphi 0, %s157
  $region4: #{tpu_custom_call.1} parent=0 // loop_header_branch
    %15 = sbr.rel (%p13) target = $region8
  $region5: #{tpu_custom_call.1} parent=0 // loop_body
    %s17 = ssub.s32 %s12, 1
    %s18 = ssub.s32 %s12, 2
    %s19 = sadd.s32 %s12, 1
    %s20 = ssub.s32 %s12, %s19
    %p21 = scmp.eq.s32.totalorder %s20, 0
    %s23 = sadd.s32 %s22, 1
    %s24 = scalar_select %p21, %s22, %s23
    %p27 = pneg %p21
    %p28 = scmp.eq.s32.totalorder %s12, 1
    %p29 = por %p27, %p28
    %p30 = scmp.ne.s32.totalorder %s22, %s25
    %p31 = scmp.eq.s32.totalorder %s12, 0
    %p32 = por %p30, %p31
    %p33 = scmp.ne.s32.totalorder %s22, %s25
    %p34 = scmp.eq.s32.totalorder %s17, 1
    %p35 = por %p33, %p34
    %p36 = scmp.ne.s32.totalorder %s25, %s26
    %p37 = scmp.eq.s32.totalorder %s17, 0
    %p38 = por %p36, %p37
    %p39 = scmp.ne.s32.totalorder %s25, %s26
    %p40 = scmp.eq.s32.totalorder %s18, 1
    %p41 = por %p39, %p40
    %p43 = scmp.ne.s32.totalorder %s26, %s42
    %p44 = scmp.eq.s32.totalorder %s18, 0
    %p45 = por %p43, %p44
    %s47 = sadd.s32 %s46, 1
    %p50 = scmp.eq.s32.totalorder %s12, 1
    %p51 = scmp.ne.s32.totalorder %s46, %s48
    %p52 = scmp.eq.s32.totalorder %s12, 0
    %p53 = por %p51, %p52
    %p54 = scmp.ne.s32.totalorder %s46, %s48
    %p55 = scmp.eq.s32.totalorder %s17, 1
    %p56 = por %p54, %p55
    %p57 = scmp.ne.s32.totalorder %s48, %s49
    %p58 = scmp.eq.s32.totalorder %s17, 0
    %p59 = por %p57, %p58
    %p60 = scmp.ne.s32.totalorder %s48, %s49
    %p61 = scmp.eq.s32.totalorder %s18, 1
    %p62 = por %p60, %p61
    %p64 = scmp.ne.s32.totalorder %s49, %s63
    %p65 = scmp.eq.s32.totalorder %s18, 0
    %p66 = por %p64, %p65
    %s68 = sadd.s32 %s67, 1
    %p71 = scmp.eq.s32.totalorder %s12, 1
    %p72 = scmp.ne.s32.totalorder %s67, %s69
    %p73 = scmp.eq.s32.totalorder %s12, 0
    %p74 = por %p72, %p73
    %p75 = scmp.ne.s32.totalorder %s67, %s69
    %p76 = scmp.eq.s32.totalorder %s17, 1
    %p77 = por %p75, %p76
    %p78 = scmp.ne.s32.totalorder %s69, %s70
    %p79 = scmp.eq.s32.totalorder %s17, 0
    %p80 = por %p78, %p79
    %p81 = scmp.ne.s32.totalorder %s69, %s70
    %p82 = scmp.eq.s32.totalorder %s18, 1
    %p83 = por %p81, %p82
    %p85 = scmp.ne.s32.totalorder %s70, %s84
    %p86 = scmp.eq.s32.totalorder %s18, 0
    %p87 = por %p85, %p86
    %s89 = sadd.s32 %s88, 1
    %p92 = scmp.eq.s32.totalorder %s12, 1
    %p93 = scmp.ne.s32.totalorder %s88, %s90
    %p94 = scmp.eq.s32.totalorder %s12, 0
    %p95 = por %p93, %p94
    %p96 = scmp.ne.s32.totalorder %s88, %s90
    %p97 = scmp.eq.s32.totalorder %s17, 1
    %p98 = por %p96, %p97
    %p99 = scmp.ne.s32.totalorder %s90, %s91
    %p100 = scmp.eq.s32.totalorder %s17, 0
    %p101 = por %p99, %p100
    %p102 = scmp.ne.s32.totalorder %s90, %s91
    %p103 = scmp.eq.s32.totalorder %s18, 1
    %p104 = por %p102, %p103
    %p106 = scmp.ne.s32.totalorder %s91, %s105
    %p107 = scmp.eq.s32.totalorder %s18, 0
    %p108 = por %p106, %p107
    %s110 = sadd.s32 %s109, 1
    %p113 = scmp.eq.s32.totalorder %s12, 1
    %p114 = scmp.ne.s32.totalorder %s109, %s111
    %p115 = scmp.eq.s32.totalorder %s12, 0
    %p116 = por %p114, %p115
    %p117 = scmp.ne.s32.totalorder %s109, %s111
    %p118 = scmp.eq.s32.totalorder %s17, 1
    %p119 = por %p117, %p118
    %p120 = scmp.ne.s32.totalorder %s111, %s112
    %p121 = scmp.eq.s32.totalorder %s17, 0
    %p122 = por %p120, %p121
    %p123 = scmp.ne.s32.totalorder %s111, %s112
    %p124 = scmp.eq.s32.totalorder %s18, 1
    %p125 = por %p123, %p124
    %p127 = scmp.ne.s32.totalorder %s112, %s126
    %p128 = scmp.eq.s32.totalorder %s18, 0
    %p129 = por %p127, %p128
    %s131 = sadd.s32 %s130, 1
    %p134 = scmp.eq.s32.totalorder %s12, 1
    %p135 = scmp.ne.s32.totalorder %s130, %s132
    %p136 = scmp.eq.s32.totalorder %s12, 0
    %p137 = por %p135, %p136
    %p138 = scmp.ne.s32.totalorder %s130, %s132
    %p139 = scmp.eq.s32.totalorder %s17, 1
    %p140 = por %p138, %p139
    %p141 = scmp.ne.s32.totalorder %s132, %s133
    %p142 = scmp.eq.s32.totalorder %s17, 0
    %p143 = por %p141, %p142
    %p144 = scmp.ne.s32.totalorder %s132, %s133
    %p145 = scmp.eq.s32.totalorder %s18, 1
    %p146 = por %p144, %p145
    %p148 = scmp.ne.s32.totalorder %s133, %s147
    %p149 = scmp.eq.s32.totalorder %s18, 0
    %p150 = por %p148, %p149
    %s151 = ssub.s32 %s12, %s19
    %p152 = scmp.eq.s32.totalorder %s151, 0
    %s154 = sadd.s32 %s153, 1
    %s155 = scalar_select %p152, %s153, %s154
    %p158 = pneg %p152
    %p159 = scmp.eq.s32.totalorder %s12, 1
    %p160 = por %p158, %p159
    %p161 = scmp.ne.s32.totalorder %s153, %s156
    %p162 = scmp.eq.s32.totalorder %s12, 0
    %p163 = por %p161, %p162
    %p164 = scmp.ne.s32.totalorder %s153, %s156
    %p165 = scmp.eq.s32.totalorder %s17, 1
    %p166 = por %p164, %p165
    %p167 = scmp.ne.s32.totalorder %s156, %s157
    %p168 = scmp.eq.s32.totalorder %s17, 0
    %p169 = por %p167, %p168
    %p170 = scmp.ne.s32.totalorder %s156, %s157
    %p171 = scmp.eq.s32.totalorder %s18, 1
    %p172 = por %p170, %p171
    %p174 = scmp.ne.s32.totalorder %s157, %s173
    %p175 = scmp.eq.s32.totalorder %s18, 0
    %p176 = por %p174, %p175
    %p177 = scmp.le.s32.totalorder 1, %s12
    %p178 = scmp.lt.s32.totalorder %s12, 3
    %p179 = pnand %p177, %p178
    %p180 = pneg %p179
    // Predicated region
    $region9: #{tpu_custom_call.1} parent=5 // pred_check
      _
    $region10: #{tpu_custom_call.1} parent=5 // pred_check_branch
      %182 = sbr.rel (%p179) target = $region12
    $region11: #{tpu_custom_call.1} parent=5 // pred_region
      %s183 = ssub.s32 %s12, 1
      // Predicated region
      $region13: #{tpu_custom_call.1} parent=11 // pred_check
        %p184 = pneg %p59
      $region14: #{tpu_custom_call.1} parent=11 // pred_check_branch
        %186 = sbr.rel (%p184) target = $region16
      $region15: #{tpu_custom_call.1} parent=11 // pred_region
        _
      $region16: #{tpu_custom_call.1} parent=11 // pred_fallthru
        _
      // Predicated region
      $region17: #{tpu_custom_call.1} parent=11 // pred_check
        %p187 = pneg %p80
      $region18: #{tpu_custom_call.1} parent=11 // pred_check_branch
        %189 = sbr.rel (%p187) target = $region20
      $region19: #{tpu_custom_call.1} parent=11 // pred_region
        _
      $region20: #{tpu_custom_call.1} parent=11 // pred_fallthru
        _
      // Predicated region
      $region21: #{tpu_custom_call.1} parent=11 // pred_check
        %p190 = pneg %p101
      $region22: #{tpu_custom_call.1} parent=11 // pred_check_branch
        %192 = sbr.rel (%p190) target = $region24
      $region23: #{tpu_custom_call.1} parent=11 // pred_region
        _
      $region24: #{tpu_custom_call.1} parent=11 // pred_fallthru
        _
      // Predicated region
      $region25: #{tpu_custom_call.1} parent=11 // pred_check
        %p193 = pneg %p122
      $region26: #{tpu_custom_call.1} parent=11 // pred_check_branch
        %195 = sbr.rel (%p193) target = $region28
      $region27: #{tpu_custom_call.1} parent=11 // pred_region
        _
      $region28: #{tpu_custom_call.1} parent=11 // pred_fallthru
        _
      // Predicated region
      $region29: #{tpu_custom_call.1} parent=11 // pred_check
        %p196 = pneg %p143
      $region30: #{tpu_custom_call.1} parent=11 // pred_check_branch
        %198 = sbr.rel (%p196) target = $region32
      $region31: #{tpu_custom_call.1} parent=11 // pred_region
        _
      $region32: #{tpu_custom_call.1} parent=11 // pred_fallthru
        _
    $region12: #{tpu_custom_call.1} parent=5 // pred_fallthru
      _
    %p199 = scmp.lt.s32.totalorder %s12, 2
    // Predicated region
    $region33: #{tpu_custom_call.1} parent=5 // pred_check
      %p200 = pneg %p199
    $region34: #{tpu_custom_call.1} parent=5 // pred_check_branch
      %202 = sbr.rel (%p200) target = $region36
    $region35: #{tpu_custom_call.1} parent=5 // pred_region
      // Predicated region
      $region37: #{tpu_custom_call.1} parent=35 // pred_check
        %p203 = pneg %p32
      $region38: #{tpu_custom_call.1} parent=35 // pred_check_branch
        %205 = sbr.rel (%p203) target = $region40
      $region39: #{tpu_custom_call.1} parent=35 // pred_region
        %p206 = scmp.lt.s32.totalorder %s12, 1
        %s207 = scalar_select %p206, %s12, 1
        %s208 = smul.addr %s207, 8
        %s209 = scalar_lea.vmem %s0, %s208
      $region40: #{tpu_custom_call.1} parent=35 // pred_fallthru
        _
    $region36: #{tpu_custom_call.1} parent=5 // pred_fallthru
      _
    %p210 = scmp.le.s32.totalorder 1, %s12
    %p211 = scmp.lt.s32.totalorder %s12, 3
    %p212 = pnand %p210, %p211
    %p213 = pneg %p212
    // Predicated region
    $region41: #{tpu_custom_call.1} parent=5 // pred_check
      _
    $region42: #{tpu_custom_call.1} parent=5 // pred_check_branch
      %215 = sbr.rel (%p212) target = $region44
    $region43: #{tpu_custom_call.1} parent=5 // pred_region
      %s216 = ssub.s32 %s12, 1
      %p217 = scmp.lt.s32.totalorder %s17, 1
      %s218 = scalar_select %p217, %s17, 1
      %s219 = smul.addr %s218, 8
      %s220 = scalar_lea.vmem %s0, %s219
      %p221 = pneg %p38
      %p222 = pneg %p35
      %p223 = pneg %p59
      %p224 = pneg %p56
      %p225 = pneg %p80
      %p226 = pneg %p77
      %p227 = pneg %p101
      %p228 = pneg %p98
      %p229 = pneg %p122
      %p230 = pneg %p119
      %p231 = pneg %p143
      %p232 = pneg %p140
      %p233 = pneg %p169
      %p234 = pneg %p166
      %p235 = scmp.lt.s32.totalorder %s17, 1
      %s236 = scalar_select %p235, %s17, 1
      %s237 = smul.addr %s236, 4
      %s238 = smul.addr %s237, 4
      %s239 = scalar_lea.vmem %s6, %s238
      %p240 = scmp.lt.s32.totalorder %s17, 1
      %s241 = scalar_select %p240, %s17, 1
      %s242 = smul.addr %s241, 8
      %s243 = scalar_lea.vmem %s0, %s242
      %p244 = scmp.lt.s32.totalorder %s17, 1
      %s245 = scalar_select %p244, %s17, 1
      %s246 = smul.addr %s245, 4
      %s247 = smul.addr %s246, 4
      %s248 = scalar_lea.vmem %s6, %s247
      %v250 = vld [vmem:[%s243] sm:$0xff]
      %v251 = vld [vmem:[%s1] sm:$0x1]
      %v252 = vld [vmem:[%s2] sm:$0x1]
      %vm253 = vcmask 130048
      %v254 = vsel %vm253, %v250, 0.0
      %255 = vadd.xlane.f32.xlu0 %v254
      %v256 = vpop.xlane.xlu0 %255
      %v257 = vrcp.pop 16.0
      %v258 = vmul.f32 %v256, %v257
      %v259 = vsub.f32 %v250, %v258
      %v260 = vmul.f32 %v259, %v259
      %v261 = vsel %vm253, %v260, 0.0
      %262 = vadd.xlane.f32.xlu0 %v261
      %v263 = vpop.xlane.xlu0 %262
      %v264 = vmul.f32 %v263, %v257
      %v265 = vadd.f32 %v264, 1e-05
      %v266 = vrsqrt.pop %v265
      %v267 = vmul.f32 %v259, %v266
      %v269 = vlaneseq
      %v270 = vshrl.u32 %v269, 7
      %v271 = vsub.s32 0, %v270
      %v272 = vrot.slane %v251, %v271
      %v274 = vmul.f32 %v267, %v272
      %v276 = vlaneseq
      %v277 = vshrl.u32 %v276, 7
      %v278 = vsub.s32 0, %v277
      %v279 = vrot.slane %v252, %v278
      %v281 = vadd.f32 %v274, %v279
      %v282 = vld [vmem:[%s3] sm:$0xff]
      %v283 = vld [vmem:[%s3 + $0x8] sm:$0xff]
      %v284 = vld [vmem:[%s3 + $0x10] sm:$0xff]
      %v285 = vld [vmem:[%s3 + $0x18] sm:$0xff]
      %v286 = vld [vmem:[%s3 + $0x20] sm:$0xff]
      %v287 = vld [vmem:[%s3 + $0x28] sm:$0xff]
      %v288 = vld [vmem:[%s3 + $0x30] sm:$0xff]
      %v289 = vld [vmem:[%s3 + $0x38] sm:$0xff]
      %v290 = vld [vmem:[%s4] sm:$0xff]
      %v291 = vld [vmem:[%s4 + $0x8] sm:$0xff]
      %v292 = vld [vmem:[%s4 + $0x10] sm:$0xff]
      %v293 = vld [vmem:[%s4 + $0x18] sm:$0xff]
      %v294 = vld [vmem:[%s4 + $0x20] sm:$0xff]
      %v295 = vld [vmem:[%s4 + $0x28] sm:$0xff]
      %v296 = vld [vmem:[%s4 + $0x30] sm:$0xff]
      %v297 = vld [vmem:[%s4 + $0x38] sm:$0xff]
      %v298 = vld [vmem:[%s5] sm:$0xff]
      %v299 = vld [vmem:[%s5 + $0x8] sm:$0xff]
      %v300 = vld [vmem:[%s5 + $0x10] sm:$0xff]
      %v301 = vld [vmem:[%s5 + $0x18] sm:$0xff]
      %v302 = vld [vmem:[%s5 + $0x20] sm:$0xff]
      %v303 = vld [vmem:[%s5 + $0x28] sm:$0xff]
      %v304 = vld [vmem:[%s5 + $0x30] sm:$0xff]
      %v305 = vld [vmem:[%s5 + $0x38] sm:$0xff]
      %v307 = vsel %vm253, %v281, 0
      %309 = vmatprep.subr.mxu0 0.0
      %310 = vmatpush1.msra.mxu0 0.0
      %311 = vmatprep.subr.mxu0 0.0
      %312 = vmatpush1.msra.mxu0 0.0
      %313 = vmatprep.subr.mxu0 0.0
      %314 = vmatpush1.msra.mxu0 0.0
      %315 = vmatprep.subr.mxu0 0.0
      %316 = vmatpush1.msra.mxu0 0.0
      %317 = vmatprep.subr.mxu0 0.0
      %318 = vmatpush1.msra.mxu0 0.0
      %319 = vmatprep.subr.mxu0 0.0
      %320 = vmatpush1.msra.mxu0 0.0
      %321 = vmatprep.subr.mxu0 0.0
      %322 = vmatpush1.msra.mxu0 0.0
      %323 = vmatprep.subr.mxu0 0.0
      %324 = vmatpush1.msra.mxu0 0.0
      %325 = vmatprep.subr.mxu0 0.0
      %326 = vmatpush1.msra.mxu0 0.0
      %327 = vmatprep.subr.mxu0 0.0
      %328 = vmatpush1.msra.mxu0 0.0
      %329 = vmatprep.subr.mxu0 0.0
      %330 = vmatpush1.msra.mxu0 0.0
      %331 = vmatprep.subr.mxu0 0.0
      %332 = vmatpush1.msra.mxu0 0.0
      %333 = vmatprep.subr.mxu0 0.0
      %334 = vmatpush1.msra.mxu0 0.0
      %335 = vmatprep.subr.mxu0 0.0
      %336 = vmatpush1.msra.mxu0 0.0
      %337 = vmatprep.subr.mxu0 0.0
      %338 = vmatpush1.msra.mxu0 %v283
      %339 = vmatprep.subr.mxu0 0.0
      %340 = vmatpush1.msra.mxu0 %v282
      %341 = vmatprep.subr.mxu0 0.0
      %342 = vmatpush2.msra.mxu0 0.0
      %343 = vmatprep.subr.mxu0 0.0
      %344 = vmatpush2.msra.mxu0 0.0
      %345 = vmatprep.subr.mxu0 0.0
      %346 = vmatpush2.msra.mxu0 0.0
      %347 = vmatprep.subr.mxu0 0.0
      %348 = vmatpush2.msra.mxu0 0.0
      %349 = vmatprep.subr.mxu0 0.0
      %350 = vmatpush2.msra.mxu0 0.0
      %351 = vmatprep.subr.mxu0 0.0
      %352 = vmatpush2.msra.mxu0 0.0
      %353 = vmatprep.subr.mxu0 0.0
      %354 = vmatpush2.msra.mxu0 0.0
      %355 = vmatprep.subr.mxu0 0.0
      %356 = vmatpush2.msra.mxu0 0.0
      %357 = vmatprep.subr.mxu0 0.0
      %358 = vmatpush2.msra.mxu0 0.0
      %359 = vmatprep.subr.mxu0 0.0
      %360 = vmatpush2.msra.mxu0 0.0
      %361 = vmatprep.subr.mxu0 0.0
      %362 = vmatpush2.msra.mxu0 0.0
      %363 = vmatprep.subr.mxu0 0.0
      %364 = vmatpush2.msra.mxu0 0.0
      %365 = vmatprep.subr.mxu0 0.0
      %366 = vmatpush2.msra.mxu0 0.0
      %367 = vmatprep.subr.mxu0 0.0
      %368 = vmatpush2.msra.mxu0 0.0
      %369 = vmatprep.subr.mxu0 0.0
      %370 = vmatpush2.msra.mxu0 0.0
      %371 = vmatprep.subr.mxu0 0.0
      %372 = vmatpush2.msra.mxu0 0.0
      %373 = vmatprep.mubr.f32.mxu0 0.0
      %374 = vmatmul.mubr.f32.gmra.mxu0 %v307
      %v375 = vpop.f32.mrf.mxu0
      %v376 = vadd.f32 0.0, %v375
      %v377 = vpop.f32.mrf.mxu0
      %378 = vdwg.mxu0
      %379 = vmatprep.subr.mxu0 0.0
      %380 = vmatpush1.msra.mxu0 0.0
      %381 = vmatprep.subr.mxu0 0.0
      %382 = vmatpush1.msra.mxu0 0.0
      %383 = vmatprep.subr.mxu0 0.0
      %384 = vmatpush1.msra.mxu0 0.0
      %385 = vmatprep.subr.mxu0 0.0
      %386 = vmatpush1.msra.mxu0 0.0
      %387 = vmatprep.subr.mxu0 0.0
      %388 = vmatpush1.msra.mxu0 0.0
      %389 = vmatprep.subr.mxu0 0.0
      %390 = vmatpush1.msra.mxu0 0.0
      %391 = vmatprep.subr.mxu0 0.0
      %392 = vmatpush1.msra.mxu0 0.0
      %393 = vmatprep.subr.mxu0 0.0
      %394 = vmatpush1.msra.mxu0 0.0
      %395 = vmatprep.subr.mxu0 0.0
      %396 = vmatpush1.msra.mxu0 0.0
      %397 = vmatprep.subr.mxu0 0.0
      %398 = vmatpush1.msra.mxu0 0.0
      %399 = vmatprep.subr.mxu0 0.0
      %400 = vmatpush1.msra.mxu0 0.0
      %401 = vmatprep.subr.mxu0 0.0
      %402 = vmatpush1.msra.mxu0 0.0
      %403 = vmatprep.subr.mxu0 0.0
      %404 = vmatpush1.msra.mxu0 0.0
      %405 = vmatprep.subr.mxu0 0.0
      %406 = vmatpush1.msra.mxu0 0.0
      %407 = vmatprep.subr.mxu0 0.0
      %408 = vmatpush1.msra.mxu0 %v285
      %409 = vmatprep.subr.mxu0 0.0
      %410 = vmatpush1.msra.mxu0 %v284
      %411 = vmatprep.subr.mxu0 0.0
      %412 = vmatpush2.msra.mxu0 0.0
      %413 = vmatprep.subr.mxu0 0.0
      %414 = vmatpush2.msra.mxu0 0.0
      %415 = vmatprep.subr.mxu0 0.0
      %416 = vmatpush2.msra.mxu0 0.0
      %417 = vmatprep.subr.mxu0 0.0
      %418 = vmatpush2.msra.mxu0 0.0
      %419 = vmatprep.subr.mxu0 0.0
      %420 = vmatpush2.msra.mxu0 0.0
      %421 = vmatprep.subr.mxu0 0.0
      %422 = vmatpush2.msra.mxu0 0.0
      %423 = vmatprep.subr.mxu0 0.0
      %424 = vmatpush2.msra.mxu0 0.0
      %425 = vmatprep.subr.mxu0 0.0
      %426 = vmatpush2.msra.mxu0 0.0
      %427 = vmatprep.subr.mxu0 0.0
      %428 = vmatpush2.msra.mxu0 0.0
      %429 = vmatprep.subr.mxu0 0.0
      %430 = vmatpush2.msra.mxu0 0.0
      %431 = vmatprep.subr.mxu0 0.0
      %432 = vmatpush2.msra.mxu0 0.0
      %433 = vmatprep.subr.mxu0 0.0
      %434 = vmatpush2.msra.mxu0 0.0
      %435 = vmatprep.subr.mxu0 0.0
      %436 = vmatpush2.msra.mxu0 0.0
      %437 = vmatprep.subr.mxu0 0.0
      %438 = vmatpush2.msra.mxu0 0.0
      %439 = vmatprep.subr.mxu0 0.0
      %440 = vmatpush2.msra.mxu0 0.0
      %441 = vmatprep.subr.mxu0 0.0
      %442 = vmatpush2.msra.mxu0 0.0
      %443 = vmatprep.mubr.f32.mxu0 0.0
      %444 = vmatmul.mubr.f32.gmra.mxu0 %v307
      %v445 = vpop.f32.mrf.mxu0
      %v446 = vadd.f32 0.0, %v445
      %v447 = vpop.f32.mrf.mxu0
      %448 = vdwg.mxu0
      %449 = vmatprep.subr.mxu0 0.0
      %450 = vmatpush1.msra.mxu0 0.0
      %451 = vmatprep.subr.mxu0 0.0
      %452 = vmatpush1.msra.mxu0 0.0
      %453 = vmatprep.subr.mxu0 0.0
      %454 = vmatpush1.msra.mxu0 0.0
      %455 = vmatprep.subr.mxu0 0.0
      %456 = vmatpush1.msra.mxu0 0.0
      %457 = vmatprep.subr.mxu0 0.0
      %458 = vmatpush1.msra.mxu0 0.0
      %459 = vmatprep.subr.mxu0 0.0
      %460 = vmatpush1.msra.mxu0 0.0
      %461 = vmatprep.subr.mxu0 0.0
      %462 = vmatpush1.msra.mxu0 0.0
      %463 = vmatprep.subr.mxu0 0.0
      %464 = vmatpush1.msra.mxu0 0.0
      %465 = vmatprep.subr.mxu0 0.0
      %466 = vmatpush1.msra.mxu0 0.0
      %467 = vmatprep.subr.mxu0 0.0
      %468 = vmatpush1.msra.mxu0 0.0
      %469 = vmatprep.subr.mxu0 0.0
      %470 = vmatpush1.msra.mxu0 0.0
      %471 = vmatprep.subr.mxu0 0.0
      %472 = vmatpush1.msra.mxu0 0.0
      %473 = vmatprep.subr.mxu0 0.0
      %474 = vmatpush1.msra.mxu0 0.0
      %475 = vmatprep.subr.mxu0 0.0
      %476 = vmatpush1.msra.mxu0 0.0
      %477 = vmatprep.subr.mxu0 0.0
      %478 = vmatpush1.msra.mxu0 %v287
      %479 = vmatprep.subr.mxu0 0.0
      %480 = vmatpush1.msra.mxu0 %v286
      %481 = vmatprep.subr.mxu0 0.0
      %482 = vmatpush2.msra.mxu0 0.0
      %483 = vmatprep.subr.mxu0 0.0
      %484 = vmatpush2.msra.mxu0 0.0
      %485 = vmatprep.subr.mxu0 0.0
      %486 = vmatpush2.msra.mxu0 0.0
      %487 = vmatprep.subr.mxu0 0.0
      %488 = vmatpush2.msra.mxu0 0.0
      %489 = vmatprep.subr.mxu0 0.0
      %490 = vmatpush2.msra.mxu0 0.0
      %491 = vmatprep.subr.mxu0 0.0
      %492 = vmatpush2.msra.mxu0 0.0
      %493 = vmatprep.subr.mxu0 0.0
      %494 = vmatpush2.msra.mxu0 0.0
      %495 = vmatprep.subr.mxu0 0.0
      %496 = vmatpush2.msra.mxu0 0.0
      %497 = vmatprep.subr.mxu0 0.0
      %498 = vmatpush2.msra.mxu0 0.0
      %499 = vmatprep.subr.mxu0 0.0
      %500 = vmatpush2.msra.mxu0 0.0
      %501 = vmatprep.subr.mxu0 0.0
      %502 = vmatpush2.msra.mxu0 0.0
      %503 = vmatprep.subr.mxu0 0.0
      %504 = vmatpush2.msra.mxu0 0.0
      %505 = vmatprep.subr.mxu0 0.0
      %506 = vmatpush2.msra.mxu0 0.0
      %507 = vmatprep.subr.mxu0 0.0
      %508 = vmatpush2.msra.mxu0 0.0
      %509 = vmatprep.subr.mxu0 0.0
      %510 = vmatpush2.msra.mxu0 0.0
      %511 = vmatprep.subr.mxu0 0.0
      %512 = vmatpush2.msra.mxu0 0.0
      %513 = vmatprep.mubr.f32.mxu0 0.0
      %514 = vmatmul.mubr.f32.gmra.mxu0 %v307
      %v515 = vpop.f32.mrf.mxu0
      %v516 = vadd.f32 0.0, %v515
      %v517 = vpop.f32.mrf.mxu0
      %518 = vdwg.mxu0
      %519 = vmatprep.subr.mxu0 0.0
      %520 = vmatpush1.msra.mxu0 0.0
      %521 = vmatprep.subr.mxu0 0.0
      %522 = vmatpush1.msra.mxu0 0.0
      %523 = vmatprep.subr.mxu0 0.0
      %524 = vmatpush1.msra.mxu0 0.0
      %525 = vmatprep.subr.mxu0 0.0
      %526 = vmatpush1.msra.mxu0 0.0
      %527 = vmatprep.subr.mxu0 0.0
      %528 = vmatpush1.msra.mxu0 0.0
      %529 = vmatprep.subr.mxu0 0.0
      %530 = vmatpush1.msra.mxu0 0.0
      %531 = vmatprep.subr.mxu0 0.0
      %532 = vmatpush1.msra.mxu0 0.0
      %533 = vmatprep.subr.mxu0 0.0
      %534 = vmatpush1.msra.mxu0 0.0
      %535 = vmatprep.subr.mxu0 0.0
      %536 = vmatpush1.msra.mxu0 0.0
      %537 = vmatprep.subr.mxu0 0.0
      %538 = vmatpush1.msra.mxu0 0.0
      %539 = vmatprep.subr.mxu0 0.0
      %540 = vmatpush1.msra.mxu0 0.0
      %541 = vmatprep.subr.mxu0 0.0
      %542 = vmatpush1.msra.mxu0 0.0
      %543 = vmatprep.subr.mxu0 0.0
      %544 = vmatpush1.msra.mxu0 0.0
      %545 = vmatprep.subr.mxu0 0.0
      %546 = vmatpush1.msra.mxu0 0.0
      %547 = vmatprep.subr.mxu0 0.0
      %548 = vmatpush1.msra.mxu0 %v289
      %549 = vmatprep.subr.mxu0 0.0
      %550 = vmatpush1.msra.mxu0 %v288
      %551 = vmatprep.subr.mxu0 0.0
      %552 = vmatpush2.msra.mxu0 0.0
      %553 = vmatprep.subr.mxu0 0.0
      %554 = vmatpush2.msra.mxu0 0.0
      %555 = vmatprep.subr.mxu0 0.0
      %556 = vmatpush2.msra.mxu0 0.0
      %557 = vmatprep.subr.mxu0 0.0
      %558 = vmatpush2.msra.mxu0 0.0
      %559 = vmatprep.subr.mxu0 0.0
      %560 = vmatpush2.msra.mxu0 0.0
      %561 = vmatprep.subr.mxu0 0.0
      %562 = vmatpush2.msra.mxu0 0.0
      %563 = vmatprep.subr.mxu0 0.0
      %564 = vmatpush2.msra.mxu0 0.0
      %565 = vmatprep.subr.mxu0 0.0
      %566 = vmatpush2.msra.mxu0 0.0
      %567 = vmatprep.subr.mxu0 0.0
      %568 = vmatpush2.msra.mxu0 0.0
      %569 = vmatprep.subr.mxu0 0.0
      %570 = vmatpush2.msra.mxu0 0.0
      %571 = vmatprep.subr.mxu0 0.0
      %572 = vmatpush2.msra.mxu0 0.0
      %573 = vmatprep.subr.mxu0 0.0
      %574 = vmatpush2.msra.mxu0 0.0
      %575 = vmatprep.subr.mxu0 0.0
      %576 = vmatpush2.msra.mxu0 0.0
      %577 = vmatprep.subr.mxu0 0.0
      %578 = vmatpush2.msra.mxu0 0.0
      %579 = vmatprep.subr.mxu0 0.0
      %580 = vmatpush2.msra.mxu0 0.0
      %581 = vmatprep.subr.mxu0 0.0
      %582 = vmatpush2.msra.mxu0 0.0
      %583 = vmatprep.mubr.f32.mxu0 0.0
      %584 = vmatmul.mubr.f32.gmra.mxu0 %v307
      %v585 = vpop.f32.mrf.mxu0
      %v586 = vadd.f32 0.0, %v585
      %v587 = vpop.f32.mrf.mxu0
      %588 = vdwg.mxu0
      %v589 = vmul.f32 %v376, 0.5
      %v590 = vmul.f32 %v446, 0.5
      %v591 = vmul.f32 %v516, 0.5
      %v592 = vmul.f32 %v586, 0.5
      %593 = vmatprep.subr.mxu0 0.0
      %594 = vmatpush1.msra.mxu0 0.0
      %595 = vmatprep.subr.mxu0 0.0
      %596 = vmatpush1.msra.mxu0 0.0
      %597 = vmatprep.subr.mxu0 0.0
      %598 = vmatpush1.msra.mxu0 0.0
      %599 = vmatprep.subr.mxu0 0.0
      %600 = vmatpush1.msra.mxu0 0.0
      %601 = vmatprep.subr.mxu0 0.0
      %602 = vmatpush1.msra.mxu0 0.0
      %603 = vmatprep.subr.mxu0 0.0
      %604 = vmatpush1.msra.mxu0 0.0
      %605 = vmatprep.subr.mxu0 0.0
      %606 = vmatpush1.msra.mxu0 0.0
      %607 = vmatprep.subr.mxu0 0.0
      %608 = vmatpush1.msra.mxu0 0.0
      %609 = vmatprep.subr.mxu0 0.0
      %610 = vmatpush1.msra.mxu0 0.0
      %611 = vmatprep.subr.mxu0 0.0
      %612 = vmatpush1.msra.mxu0 0.0
      %613 = vmatprep.subr.mxu0 0.0
      %614 = vmatpush1.msra.mxu0 0.0
      %615 = vmatprep.subr.mxu0 0.0
      %616 = vmatpush1.msra.mxu0 0.0
      %617 = vmatprep.subr.mxu0 0.0
      %618 = vmatpush1.msra.mxu0 0.0
      %619 = vmatprep.subr.mxu0 0.0
      %620 = vmatpush1.msra.mxu0 0.0
      %621 = vmatprep.subr.mxu0 0.0
      %622 = vmatpush1.msra.mxu0 %v291
      %623 = vmatprep.subr.mxu0 0.0
      %624 = vmatpush1.msra.mxu0 %v290
      %625 = vmatprep.subr.mxu0 0.0
      %626 = vmatpush2.msra.mxu0 0.0
      %627 = vmatprep.subr.mxu0 0.0
      %628 = vmatpush2.msra.mxu0 0.0
      %629 = vmatprep.subr.mxu0 0.0
      %630 = vmatpush2.msra.mxu0 0.0
      %631 = vmatprep.subr.mxu0 0.0
      %632 = vmatpush2.msra.mxu0 0.0
      %633 = vmatprep.subr.mxu0 0.0
      %634 = vmatpush2.msra.mxu0 0.0
      %635 = vmatprep.subr.mxu0 0.0
      %636 = vmatpush2.msra.mxu0 0.0
      %637 = vmatprep.subr.mxu0 0.0
      %638 = vmatpush2.msra.mxu0 0.0
      %639 = vmatprep.subr.mxu0 0.0
      %640 = vmatpush2.msra.mxu0 0.0
      %641 = vmatprep.subr.mxu0 0.0
      %642 = vmatpush2.msra.mxu0 0.0
      %643 = vmatprep.subr.mxu0 0.0
      %644 = vmatpush2.msra.mxu0 0.0
      %645 = vmatprep.subr.mxu0 0.0
      %646 = vmatpush2.msra.mxu0 0.0
      %647 = vmatprep.subr.mxu0 0.0
      %648 = vmatpush2.msra.mxu0 0.0
      %649 = vmatprep.subr.mxu0 0.0
      %650 = vmatpush2.msra.mxu0 0.0
      %651 = vmatprep.subr.mxu0 0.0
      %652 = vmatpush2.msra.mxu0 0.0
      %653 = vmatprep.subr.mxu0 0.0
      %654 = vmatpush2.msra.mxu0 0.0
      %655 = vmatprep.subr.mxu0 0.0
      %656 = vmatpush2.msra.mxu0 0.0
      %657 = vmatprep.mubr.f32.mxu0 0.0
      %658 = vmatmul.mubr.f32.gmra.mxu0 %v307
      %v659 = vpop.f32.mrf.mxu0
      %v660 = vadd.f32 0.0, %v659
      %v661 = vpop.f32.mrf.mxu0
      %662 = vdwg.mxu0
      %663 = vmatprep.subr.mxu0 0.0
      %664 = vmatpush1.msra.mxu0 0.0
      %665 = vmatprep.subr.mxu0 0.0
      %666 = vmatpush1.msra.mxu0 0.0
      %667 = vmatprep.subr.mxu0 0.0
      %668 = vmatpush1.msra.mxu0 0.0
      %669 = vmatprep.subr.mxu0 0.0
      %670 = vmatpush1.msra.mxu0 0.0
      %671 = vmatprep.subr.mxu0 0.0
      %672 = vmatpush1.msra.mxu0 0.0
      %673 = vmatprep.subr.mxu0 0.0
      %674 = vmatpush1.msra.mxu0 0.0
      %675 = vmatprep.subr.mxu0 0.0
      %676 = vmatpush1.msra.mxu0 0.0
      %677 = vmatprep.subr.mxu0 0.0
      %678 = vmatpush1.msra.mxu0 0.0
      %679 = vmatprep.subr.mxu0 0.0
      %680 = vmatpush1.msra.mxu0 0.0
      %681 = vmatprep.subr.mxu0 0.0
      %682 = vmatpush1.msra.mxu0 0.0
      %683 = vmatprep.subr.mxu0 0.0
      %684 = vmatpush1.msra.mxu0 0.0
      %685 = vmatprep.subr.mxu0 0.0
      %686 = vmatpush1.msra.mxu0 0.0
      %687 = vmatprep.subr.mxu0 0.0
      %688 = vmatpush1.msra.mxu0 0.0
      %689 = vmatprep.subr.mxu0 0.0
      %690 = vmatpush1.msra.mxu0 0.0
      %691 = vmatprep.subr.mxu0 0.0
      %692 = vmatpush1.msra.mxu0 %v293
      %693 = vmatprep.subr.mxu0 0.0
      %694 = vmatpush1.msra.mxu0 %v292
      %695 = vmatprep.subr.mxu0 0.0
      %696 = vmatpush2.msra.mxu0 0.0
      %697 = vmatprep.subr.mxu0 0.0
      %698 = vmatpush2.msra.mxu0 0.0
      %699 = vmatprep.subr.mxu0 0.0
      %700 = vmatpush2.msra.mxu0 0.0
      %701 = vmatprep.subr.mxu0 0.0
      %702 = vmatpush2.msra.mxu0 0.0
      %703 = vmatprep.subr.mxu0 0.0
      %704 = vmatpush2.msra.mxu0 0.0
      %705 = vmatprep.subr.mxu0 0.0
      %706 = vmatpush2.msra.mxu0 0.0
      %707 = vmatprep.subr.mxu0 0.0
      %708 = vmatpush2.msra.mxu0 0.0
      %709 = vmatprep.subr.mxu0 0.0
      %710 = vmatpush2.msra.mxu0 0.0
      %711 = vmatprep.subr.mxu0 0.0
      %712 = vmatpush2.msra.mxu0 0.0
      %713 = vmatprep.subr.mxu0 0.0
      %714 = vmatpush2.msra.mxu0 0.0
      %715 = vmatprep.subr.mxu0 0.0
      %716 = vmatpush2.msra.mxu0 0.0
      %717 = vmatprep.subr.mxu0 0.0
      %718 = vmatpush2.msra.mxu0 0.0
      %719 = vmatprep.subr.mxu0 0.0
      %720 = vmatpush2.msra.mxu0 0.0
      %721 = vmatprep.subr.mxu0 0.0
      %722 = vmatpush2.msra.mxu0 0.0
      %723 = vmatprep.subr.mxu0 0.0
      %724 = vmatpush2.msra.mxu0 0.0
      %725 = vmatprep.subr.mxu0 0.0
      %726 = vmatpush2.msra.mxu0 0.0
      %727 = vmatprep.mubr.f32.mxu0 0.0
      %728 = vmatmul.mubr.f32.gmra.mxu0 %v307
      %v729 = vpop.f32.mrf.mxu0
      %v730 = vadd.f32 0.0, %v729
      %v731 = vpop.f32.mrf.mxu0
      %732 = vdwg.mxu0
      %733 = vmatprep.subr.mxu0 0.0
      %734 = vmatpush1.msra.mxu0 0.0
      %735 = vmatprep.subr.mxu0 0.0
      %736 = vmatpush1.msra.mxu0 0.0
      %737 = vmatprep.subr.mxu0 0.0
      %738 = vmatpush1.msra.mxu0 0.0
      %739 = vmatprep.subr.mxu0 0.0
      %740 = vmatpush1.msra.mxu0 0.0
      %741 = vmatprep.subr.mxu0 0.0
      %742 = vmatpush1.msra.mxu0 0.0
      %743 = vmatprep.subr.mxu0 0.0
      %744 = vmatpush1.msra.mxu0 0.0
      %745 = vmatprep.subr.mxu0 0.0
      %746 = vmatpush1.msra.mxu0 0.0
      %747 = vmatprep.subr.mxu0 0.0
      %748 = vmatpush1.msra.mxu0 0.0
      %749 = vmatprep.subr.mxu0 0.0
      %750 = vmatpush1.msra.mxu0 0.0
      %751 = vmatprep.subr.mxu0 0.0
      %752 = vmatpush1.msra.mxu0 0.0
      %753 = vmatprep.subr.mxu0 0.0
      %754 = vmatpush1.msra.mxu0 0.0
      %755 = vmatprep.subr.mxu0 0.0
      %756 = vmatpush1.msra.mxu0 0.0
      %757 = vmatprep.subr.mxu0 0.0
      %758 = vmatpush1.msra.mxu0 0.0
      %759 = vmatprep.subr.mxu0 0.0
      %760 = vmatpush1.msra.mxu0 0.0
      %761 = vmatprep.subr.mxu0 0.0
      %762 = vmatpush1.msra.mxu0 %v295
      %763 = vmatprep.subr.mxu0 0.0
      %764 = vmatpush1.msra.mxu0 %v294
      %765 = vmatprep.subr.mxu0 0.0
      %766 = vmatpush2.msra.mxu0 0.0
      %767 = vmatprep.subr.mxu0 0.0
      %768 = vmatpush2.msra.mxu0 0.0
      %769 = vmatprep.subr.mxu0 0.0
      %770 = vmatpush2.msra.mxu0 0.0
      %771 = vmatprep.subr.mxu0 0.0
      %772 = vmatpush2.msra.mxu0 0.0
      %773 = vmatprep.subr.mxu0 0.0
      %774 = vmatpush2.msra.mxu0 0.0
      %775 = vmatprep.subr.mxu0 0.0
      %776 = vmatpush2.msra.mxu0 0.0
      %777 = vmatprep.subr.mxu0 0.0
      %778 = vmatpush2.msra.mxu0 0.0
      %779 = vmatprep.subr.mxu0 0.0
      %780 = vmatpush2.msra.mxu0 0.0
      %781 = vmatprep.subr.mxu0 0.0
      %782 = vmatpush2.msra.mxu0 0.0
      %783 = vmatprep.subr.mxu0 0.0
      %784 = vmatpush2.msra.mxu0 0.0
      %785 = vmatprep.subr.mxu0 0.0
      %786 = vmatpush2.msra.mxu0 0.0
      %787 = vmatprep.subr.mxu0 0.0
      %788 = vmatpush2.msra.mxu0 0.0
      %789 = vmatprep.subr.mxu0 0.0
      %790 = vmatpush2.msra.mxu0 0.0
      %791 = vmatprep.subr.mxu0 0.0
      %792 = vmatpush2.msra.mxu0 0.0
      %793 = vmatprep.subr.mxu0 0.0
      %794 = vmatpush2.msra.mxu0 0.0
      %795 = vmatprep.subr.mxu0 0.0
      %796 = vmatpush2.msra.mxu0 0.0
      %797 = vmatprep.mubr.f32.mxu0 0.0
      %798 = vmatmul.mubr.f32.gmra.mxu0 %v307
      %v799 = vpop.f32.mrf.mxu0
      %v800 = vadd.f32 0.0, %v799
      %v801 = vpop.f32.mrf.mxu0
      %802 = vdwg.mxu0
      %803 = vmatprep.subr.mxu0 0.0
      %804 = vmatpush1.msra.mxu0 0.0
      %805 = vmatprep.subr.mxu0 0.0
      %806 = vmatpush1.msra.mxu0 0.0
      %807 = vmatprep.subr.mxu0 0.0
      %808 = vmatpush1.msra.mxu0 0.0
      %809 = vmatprep.subr.mxu0 0.0
      %810 = vmatpush1.msra.mxu0 0.0
      %811 = vmatprep.subr.mxu0 0.0
      %812 = vmatpush1.msra.mxu0 0.0
      %813 = vmatprep.subr.mxu0 0.0
      %814 = vmatpush1.msra.mxu0 0.0
      %815 = vmatprep.subr.mxu0 0.0
      %816 = vmatpush1.msra.mxu0 0.0
      %817 = vmatprep.subr.mxu0 0.0
      %818 = vmatpush1.msra.mxu0 0.0
      %819 = vmatprep.subr.mxu0 0.0
      %820 = vmatpush1.msra.mxu0 0.0
      %821 = vmatprep.subr.mxu0 0.0
      %822 = vmatpush1.msra.mxu0 0.0
      %823 = vmatprep.subr.mxu0 0.0
      %824 = vmatpush1.msra.mxu0 0.0
      %825 = vmatprep.subr.mxu0 0.0
      %826 = vmatpush1.msra.mxu0 0.0
      %827 = vmatprep.subr.mxu0 0.0
      %828 = vmatpush1.msra.mxu0 0.0
      %829 = vmatprep.subr.mxu0 0.0
      %830 = vmatpush1.msra.mxu0 0.0
      %831 = vmatprep.subr.mxu0 0.0
      %832 = vmatpush1.msra.mxu0 %v297
      %833 = vmatprep.subr.mxu0 0.0
      %834 = vmatpush1.msra.mxu0 %v296
      %835 = vmatprep.subr.mxu0 0.0
      %836 = vmatpush2.msra.mxu0 0.0
      %837 = vmatprep.subr.mxu0 0.0
      %838 = vmatpush2.msra.mxu0 0.0
      %839 = vmatprep.subr.mxu0 0.0
      %840 = vmatpush2.msra.mxu0 0.0
      %841 = vmatprep.subr.mxu0 0.0
      %842 = vmatpush2.msra.mxu0 0.0
      %843 = vmatprep.subr.mxu0 0.0
      %844 = vmatpush2.msra.mxu0 0.0
      %845 = vmatprep.subr.mxu0 0.0
      %846 = vmatpush2.msra.mxu0 0.0
      %847 = vmatprep.subr.mxu0 0.0
      %848 = vmatpush2.msra.mxu0 0.0
      %849 = vmatprep.subr.mxu0 0.0
      %850 = vmatpush2.msra.mxu0 0.0
      %851 = vmatprep.subr.mxu0 0.0
      %852 = vmatpush2.msra.mxu0 0.0
      %853 = vmatprep.subr.mxu0 0.0
      %854 = vmatpush2.msra.mxu0 0.0
      %855 = vmatprep.subr.mxu0 0.0
      %856 = vmatpush2.msra.mxu0 0.0
      %857 = vmatprep.subr.mxu0 0.0
      %858 = vmatpush2.msra.mxu0 0.0
      %859 = vmatprep.subr.mxu0 0.0
      %860 = vmatpush2.msra.mxu0 0.0
      %861 = vmatprep.subr.mxu0 0.0
      %862 = vmatpush2.msra.mxu0 0.0
      %863 = vmatprep.subr.mxu0 0.0
      %864 = vmatpush2.msra.mxu0 0.0
      %865 = vmatprep.subr.mxu0 0.0
      %866 = vmatpush2.msra.mxu0 0.0
      %867 = vmatprep.mubr.f32.mxu0 0.0
      %868 = vmatmul.mubr.f32.gmra.mxu0 %v307
      %v869 = vpop.f32.mrf.mxu0
      %v870 = vadd.f32 0.0, %v869
      %v871 = vpop.f32.mrf.mxu0
      %872 = vdwg.mxu0
      %873 = vmatprep.subr.mxu0 0.0
      %874 = vmatpush1.msra.mxu0 0.0
      %875 = vmatprep.subr.mxu0 0.0
      %876 = vmatpush1.msra.mxu0 0.0
      %877 = vmatprep.subr.mxu0 0.0
      %878 = vmatpush1.msra.mxu0 0.0
      %879 = vmatprep.subr.mxu0 0.0
      %880 = vmatpush1.msra.mxu0 0.0
      %881 = vmatprep.subr.mxu0 0.0
      %882 = vmatpush1.msra.mxu0 0.0
      %883 = vmatprep.subr.mxu0 0.0
      %884 = vmatpush1.msra.mxu0 0.0
      %885 = vmatprep.subr.mxu0 0.0
      %886 = vmatpush1.msra.mxu0 0.0
      %887 = vmatprep.subr.mxu0 0.0
      %888 = vmatpush1.msra.mxu0 0.0
      %889 = vmatprep.subr.mxu0 0.0
      %890 = vmatpush1.msra.mxu0 0.0
      %891 = vmatprep.subr.mxu0 0.0
      %892 = vmatpush1.msra.mxu0 0.0
      %893 = vmatprep.subr.mxu0 0.0
      %894 = vmatpush1.msra.mxu0 0.0
      %895 = vmatprep.subr.mxu0 0.0
      %896 = vmatpush1.msra.mxu0 0.0
      %897 = vmatprep.subr.mxu0 0.0
      %898 = vmatpush1.msra.mxu0 0.0
      %899 = vmatprep.subr.mxu0 0.0
      %900 = vmatpush1.msra.mxu0 0.0
      %901 = vmatprep.subr.mxu0 0.0
      %902 = vmatpush1.msra.mxu0 %v299
      %903 = vmatprep.subr.mxu0 0.0
      %904 = vmatpush1.msra.mxu0 %v298
      %905 = vmatprep.subr.mxu0 0.0
      %906 = vmatpush2.msra.mxu0 0.0
      %907 = vmatprep.subr.mxu0 0.0
      %908 = vmatpush2.msra.mxu0 0.0
      %909 = vmatprep.subr.mxu0 0.0
      %910 = vmatpush2.msra.mxu0 0.0
      %911 = vmatprep.subr.mxu0 0.0
      %912 = vmatpush2.msra.mxu0 0.0
      %913 = vmatprep.subr.mxu0 0.0
      %914 = vmatpush2.msra.mxu0 0.0
      %915 = vmatprep.subr.mxu0 0.0
      %916 = vmatpush2.msra.mxu0 0.0
      %917 = vmatprep.subr.mxu0 0.0
      %918 = vmatpush2.msra.mxu0 0.0
      %919 = vmatprep.subr.mxu0 0.0
      %920 = vmatpush2.msra.mxu0 0.0
      %921 = vmatprep.subr.mxu0 0.0
      %922 = vmatpush2.msra.mxu0 0.0
      %923 = vmatprep.subr.mxu0 0.0
      %924 = vmatpush2.msra.mxu0 0.0
      %925 = vmatprep.subr.mxu0 0.0
      %926 = vmatpush2.msra.mxu0 0.0
      %927 = vmatprep.subr.mxu0 0.0
      %928 = vmatpush2.msra.mxu0 0.0
      %929 = vmatprep.subr.mxu0 0.0
      %930 = vmatpush2.msra.mxu0 0.0
      %931 = vmatprep.subr.mxu0 0.0
      %932 = vmatpush2.msra.mxu0 0.0
      %933 = vmatprep.subr.mxu0 0.0
      %934 = vmatpush2.msra.mxu0 0.0
      %935 = vmatprep.subr.mxu0 0.0
      %936 = vmatpush2.msra.mxu0 0.0
      %937 = vmatprep.mubr.f32.mxu0 0.0
      %938 = vmatmul.mubr.f32.gmra.mxu0 %v307
      %v939 = vpop.f32.mrf.mxu0
      %v940 = vadd.f32 0.0, %v939
      %v941 = vpop.f32.mrf.mxu0
      %942 = vdwg.mxu0
      %943 = vmatprep.subr.mxu0 0.0
      %944 = vmatpush1.msra.mxu0 0.0
      %945 = vmatprep.subr.mxu0 0.0
      %946 = vmatpush1.msra.mxu0 0.0
      %947 = vmatprep.subr.mxu0 0.0
      %948 = vmatpush1.msra.mxu0 0.0
      %949 = vmatprep.subr.mxu0 0.0
      %950 = vmatpush1.msra.mxu0 0.0
      %951 = vmatprep.subr.mxu0 0.0
      %952 = vmatpush1.msra.mxu0 0.0
      %953 = vmatprep.subr.mxu0 0.0
      %954 = vmatpush1.msra.mxu0 0.0
      %955 = vmatprep.subr.mxu0 0.0
      %956 = vmatpush1.msra.mxu0 0.0
      %957 = vmatprep.subr.mxu0 0.0
      %958 = vmatpush1.msra.mxu0 0.0
      %959 = vmatprep.subr.mxu0 0.0
      %960 = vmatpush1.msra.mxu0 0.0
      %961 = vmatprep.subr.mxu0 0.0
      %962 = vmatpush1.msra.mxu0 0.0
      %963 = vmatprep.subr.mxu0 0.0
      %964 = vmatpush1.msra.mxu0 0.0
      %965 = vmatprep.subr.mxu0 0.0
      %966 = vmatpush1.msra.mxu0 0.0
      %967 = vmatprep.subr.mxu0 0.0
      %968 = vmatpush1.msra.mxu0 0.0
      %969 = vmatprep.subr.mxu0 0.0
      %970 = vmatpush1.msra.mxu0 0.0
      %971 = vmatprep.subr.mxu0 0.0
      %972 = vmatpush1.msra.mxu0 %v301
      %973 = vmatprep.subr.mxu0 0.0
      %974 = vmatpush1.msra.mxu0 %v300
      %975 = vmatprep.subr.mxu0 0.0
      %976 = vmatpush2.msra.mxu0 0.0
      %977 = vmatprep.subr.mxu0 0.0
      %978 = vmatpush2.msra.mxu0 0.0
      %979 = vmatprep.subr.mxu0 0.0
      %980 = vmatpush2.msra.mxu0 0.0
      %981 = vmatprep.subr.mxu0 0.0
      %982 = vmatpush2.msra.mxu0 0.0
      %983 = vmatprep.subr.mxu0 0.0
      %984 = vmatpush2.msra.mxu0 0.0
      %985 = vmatprep.subr.mxu0 0.0
      %986 = vmatpush2.msra.mxu0 0.0
      %987 = vmatprep.subr.mxu0 0.0
      %988 = vmatpush2.msra.mxu0 0.0
      %989 = vmatprep.subr.mxu0 0.0
      %990 = vmatpush2.msra.mxu0 0.0
      %991 = vmatprep.subr.mxu0 0.0
      %992 = vmatpush2.msra.mxu0 0.0
      %993 = vmatprep.subr.mxu0 0.0
      %994 = vmatpush2.msra.mxu0 0.0
      %995 = vmatprep.subr.mxu0 0.0
      %996 = vmatpush2.msra.mxu0 0.0
      %997 = vmatprep.subr.mxu0 0.0
      %998 = vmatpush2.msra.mxu0 0.0
      %999 = vmatprep.subr.mxu0 0.0
      %1000 = vmatpush2.msra.mxu0 0.0
      %1001 = vmatprep.subr.mxu0 0.0
      %1002 = vmatpush2.msra.mxu0 0.0
      %1003 = vmatprep.subr.mxu0 0.0
      %1004 = vmatpush2.msra.mxu0 0.0
      %1005 = vmatprep.subr.mxu0 0.0
      %1006 = vmatpush2.msra.mxu0 0.0
      %1007 = vmatprep.mubr.f32.mxu0 0.0
      %1008 = vmatmul.mubr.f32.gmra.mxu0 %v307
      %v1009 = vpop.f32.mrf.mxu0
      %v1010 = vadd.f32 0.0, %v1009
      %v1011 = vpop.f32.mrf.mxu0
      %1012 = vdwg.mxu0
      %1013 = vmatprep.subr.mxu0 0.0
      %1014 = vmatpush1.msra.mxu0 0.0
      %1015 = vmatprep.subr.mxu0 0.0
      %1016 = vmatpush1.msra.mxu0 0.0
      %1017 = vmatprep.subr.mxu0 0.0
      %1018 = vmatpush1.msra.mxu0 0.0
      %1019 = vmatprep.subr.mxu0 0.0
      %1020 = vmatpush1.msra.mxu0 0.0
      %1021 = vmatprep.subr.mxu0 0.0
      %1022 = vmatpush1.msra.mxu0 0.0
      %1023 = vmatprep.subr.mxu0 0.0
      %1024 = vmatpush1.msra.mxu0 0.0
      %1025 = vmatprep.subr.mxu0 0.0
      %1026 = vmatpush1.msra.mxu0 0.0
      %1027 = vmatprep.subr.mxu0 0.0
      %1028 = vmatpush1.msra.mxu0 0.0
      %1029 = vmatprep.subr.mxu0 0.0
      %1030 = vmatpush1.msra.mxu0 0.0
      %1031 = vmatprep.subr.mxu0 0.0
      %1032 = vmatpush1.msra.mxu0 0.0
      %1033 = vmatprep.subr.mxu0 0.0
      %1034 = vmatpush1.msra.mxu0 0.0
      %1035 = vmatprep.subr.mxu0 0.0
      %1036 = vmatpush1.msra.mxu0 0.0
      %1037 = vmatprep.subr.mxu0 0.0
      %1038 = vmatpush1.msra.mxu0 0.0
      %1039 = vmatprep.subr.mxu0 0.0
      %1040 = vmatpush1.msra.mxu0 0.0
      %1041 = vmatprep.subr.mxu0 0.0
      %1042 = vmatpush1.msra.mxu0 %v303
      %1043 = vmatprep.subr.mxu0 0.0
      %1044 = vmatpush1.msra.mxu0 %v302
      %1045 = vmatprep.subr.mxu0 0.0
      %1046 = vmatpush2.msra.mxu0 0.0
      %1047 = vmatprep.subr.mxu0 0.0
      %1048 = vmatpush2.msra.mxu0 0.0
      %1049 = vmatprep.subr.mxu0 0.0
      %1050 = vmatpush2.msra.mxu0 0.0
      %1051 = vmatprep.subr.mxu0 0.0
      %1052 = vmatpush2.msra.mxu0 0.0
      %1053 = vmatprep.subr.mxu0 0.0
      %1054 = vmatpush2.msra.mxu0 0.0
      %1055 = vmatprep.subr.mxu0 0.0
      %1056 = vmatpush2.msra.mxu0 0.0
      %1057 = vmatprep.subr.mxu0 0.0
      %1058 = vmatpush2.msra.mxu0 0.0
      %1059 = vmatprep.subr.mxu0 0.0
      %1060 = vmatpush2.msra.mxu0 0.0
      %1061 = vmatprep.subr.mxu0 0.0
      %1062 = vmatpush2.msra.mxu0 0.0
      %1063 = vmatprep.subr.mxu0 0.0
      %1064 = vmatpush2.msra.mxu0 0.0
      %1065 = vmatprep.subr.mxu0 0.0
      %1066 = vmatpush2.msra.mxu0 0.0
      %1067 = vmatprep.subr.mxu0 0.0
      %1068 = vmatpush2.msra.mxu0 0.0
      %1069 = vmatprep.subr.mxu0 0.0
      %1070 = vmatpush2.msra.mxu0 0.0
      %1071 = vmatprep.subr.mxu0 0.0
      %1072 = vmatpush2.msra.mxu0 0.0
      %1073 = vmatprep.subr.mxu0 0.0
      %1074 = vmatpush2.msra.mxu0 0.0
      %1075 = vmatprep.subr.mxu0 0.0
      %1076 = vmatpush2.msra.mxu0 0.0
      %1077 = vmatprep.mubr.f32.mxu0 0.0
      %1078 = vmatmul.mubr.f32.gmra.mxu0 %v307
      %v1079 = vpop.f32.mrf.mxu0
      %v1080 = vadd.f32 0.0, %v1079
      %v1081 = vpop.f32.mrf.mxu0
      %1082 = vdwg.mxu0
      %1083 = vmatprep.subr.mxu0 0.0
      %1084 = vmatpush1.msra.mxu0 0.0
      %1085 = vmatprep.subr.mxu0 0.0
      %1086 = vmatpush1.msra.mxu0 0.0
      %1087 = vmatprep.subr.mxu0 0.0
      %1088 = vmatpush1.msra.mxu0 0.0
      %1089 = vmatprep.subr.mxu0 0.0
      %1090 = vmatpush1.msra.mxu0 0.0
      %1091 = vmatprep.subr.mxu0 0.0
      %1092 = vmatpush1.msra.mxu0 0.0
      %1093 = vmatprep.subr.mxu0 0.0
      %1094 = vmatpush1.msra.mxu0 0.0
      %1095 = vmatprep.subr.mxu0 0.0
      %1096 = vmatpush1.msra.mxu0 0.0
      %1097 = vmatprep.subr.mxu0 0.0
      %1098 = vmatpush1.msra.mxu0 0.0
      %1099 = vmatprep.subr.mxu0 0.0
      %1100 = vmatpush1.msra.mxu0 0.0
      %1101 = vmatprep.subr.mxu0 0.0
      %1102 = vmatpush1.msra.mxu0 0.0
      %1103 = vmatprep.subr.mxu0 0.0
      %1104 = vmatpush1.msra.mxu0 0.0
      %1105 = vmatprep.subr.mxu0 0.0
      %1106 = vmatpush1.msra.mxu0 0.0
      %1107 = vmatprep.subr.mxu0 0.0
      %1108 = vmatpush1.msra.mxu0 0.0
      %1109 = vmatprep.subr.mxu0 0.0
      %1110 = vmatpush1.msra.mxu0 0.0
      %1111 = vmatprep.subr.mxu0 0.0
      %1112 = vmatpush1.msra.mxu0 %v305
      %1113 = vmatprep.subr.mxu0 0.0
      %1114 = vmatpush1.msra.mxu0 %v304
      %1115 = vmatprep.subr.mxu0 0.0
      %1116 = vmatpush2.msra.mxu0 0.0
      %1117 = vmatprep.subr.mxu0 0.0
      %1118 = vmatpush2.msra.mxu0 0.0
      %1119 = vmatprep.subr.mxu0 0.0
      %1120 = vmatpush2.msra.mxu0 0.0
      %1121 = vmatprep.subr.mxu0 0.0
      %1122 = vmatpush2.msra.mxu0 0.0
      %1123 = vmatprep.subr.mxu0 0.0
      %1124 = vmatpush2.msra.mxu0 0.0
      %1125 = vmatprep.subr.mxu0 0.0
      %1126 = vmatpush2.msra.mxu0 0.0
      %1127 = vmatprep.subr.mxu0 0.0
      %1128 = vmatpush2.msra.mxu0 0.0
      %1129 = vmatprep.subr.mxu0 0.0
      %1130 = vmatpush2.msra.mxu0 0.0
      %1131 = vmatprep.subr.mxu0 0.0
      %1132 = vmatpush2.msra.mxu0 0.0
      %1133 = vmatprep.subr.mxu0 0.0
      %1134 = vmatpush2.msra.mxu0 0.0
      %1135 = vmatprep.subr.mxu0 0.0
      %1136 = vmatpush2.msra.mxu0 0.0
      %1137 = vmatprep.subr.mxu0 0.0
      %1138 = vmatpush2.msra.mxu0 0.0
      %1139 = vmatprep.subr.mxu0 0.0
      %1140 = vmatpush2.msra.mxu0 0.0
      %1141 = vmatprep.subr.mxu0 0.0
      %1142 = vmatpush2.msra.mxu0 0.0
      %1143 = vmatprep.subr.mxu0 0.0
      %1144 = vmatpush2.msra.mxu0 0.0
      %1145 = vmatprep.subr.mxu0 0.0
      %1146 = vmatpush2.msra.mxu0 0.0
      %1147 = vmatprep.mubr.f32.mxu0 0.0
      %1148 = vmatmul.mubr.f32.gmra.mxu0 %v307
      %v1149 = vpop.f32.mrf.mxu0
      %v1150 = vadd.f32 0.0, %v1149
      %v1151 = vpop.f32.mrf.mxu0
      %1152 = vdwg.mxu0
      %v1153 = vpack.c.bf16 %v589, %v589
      %v1154 = vpack.c.bf16 %v590, %v590
      %v1155 = vpack.c.bf16 %v591, %v591
      %v1156 = vpack.c.bf16 %v592, %v592
      %v1157 = vpack.c.bf16 %v660, %v660
      %v1158 = vpack.c.bf16 %v730, %v730
      %v1159 = vpack.c.bf16 %v800, %v800
      %v1160 = vpack.c.bf16 %v870, %v870
      %vm1161 = vcmask 31744
      %v1163 = vsel %vm1161, %v1153, 0
      %v1166 = vsel %vm1161, %v1157, 0
      %1168 = vmatprep.subr.bf16.mxu0 0
      %1169 = vmatpush1.bf16.xpose.msra.mxu0 0
      %1170 = vmatprep.subr.bf16.mxu0 0
      %1171 = vmatpush1.bf16.xpose.msra.mxu0 0
      %1172 = vmatprep.subr.bf16.mxu0 0
      %1173 = vmatpush1.bf16.xpose.msra.mxu0 0
      %1174 = vmatprep.subr.bf16.mxu0 0
      %1175 = vmatpush1.bf16.xpose.msra.mxu0 0
      %1176 = vmatprep.subr.bf16.mxu0 0
      %1177 = vmatpush1.bf16.xpose.msra.mxu0 0
      %1178 = vmatprep.subr.bf16.mxu0 0
      %1179 = vmatpush1.bf16.xpose.msra.mxu0 0
      %1180 = vmatprep.subr.bf16.mxu0 0
      %1181 = vmatpush1.bf16.xpose.msra.mxu0 0
      %1182 = vmatprep.subr.bf16.mxu0 0
      %1183 = vmatpush1.bf16.xpose.msra.mxu0 %v1166
      %1184 = vmatprep.subr.bf16.mxu0 0
      %1185 = vmatpush2.bf16.xpose.msra.mxu0 0
      %1186 = vmatprep.subr.bf16.mxu0 0
      %1187 = vmatpush2.bf16.xpose.msra.mxu0 0
      %1188 = vmatprep.subr.bf16.mxu0 0
      %1189 = vmatpush2.bf16.xpose.msra.mxu0 0
      %1190 = vmatprep.subr.bf16.mxu0 0
      %1191 = vmatpush2.bf16.xpose.msra.mxu0 0
      %1192 = vmatprep.subr.bf16.mxu0 0
      %1193 = vmatpush2.bf16.xpose.msra.mxu0 0
      %1194 = vmatprep.subr.bf16.mxu0 0
      %1195 = vmatpush2.bf16.xpose.msra.mxu0 0
      %1196 = vmatprep.subr.bf16.mxu0 0
      %1197 = vmatpush2.bf16.xpose.msra.mxu0 0
      %1198 = vmatprep.subr.bf16.mxu0 0
      %1199 = vmatpush2.bf16.xpose.msra.mxu0 0
      %1200 = vmatprep.mubr.bf16.mxu0 0
      %1201 = vmatmul.mubr.bf16.gmra.mxu0 %v1163
      %v1202 = vpop.f32.mrf.mxu0
      %v1203 = vadd.f32 0.0, %v1202
      %v1204 = vpop.f32.mrf.mxu0
      %v1205 = vpop.f32.mrf.mxu0
      %v1206 = vpop.f32.mrf.mxu0
      %1207 = vdwg.mxu0
      %v1209 = vsel %vm1161, %v1154, 0
      %v1212 = vsel %vm1161, %v1158, 0
      %1214 = vmatprep.subr.bf16.mxu0 0
      %1215 = vmatpush1.bf16.xpose.msra.mxu0 0
      %1216 = vmatprep.subr.bf16.mxu0 0
      %1217 = vmatpush1.bf16.xpose.msra.mxu0 0
      %1218 = vmatprep.subr.bf16.mxu0 0
      %1219 = vmatpush1.bf16.xpose.msra.mxu0 0
      %1220 = vmatprep.subr.bf16.mxu0 0
      %1221 = vmatpush1.bf16.xpose.msra.mxu0 0
      %1222 = vmatprep.subr.bf16.mxu0 0
      %1223 = vmatpush1.bf16.xpose.msra.mxu0 0
      %1224 = vmatprep.subr.bf16.mxu0 0
      %1225 = vmatpush1.bf16.xpose.msra.mxu0 0
      %1226 = vmatprep.subr.bf16.mxu0 0
      %1227 = vmatpush1.bf16.xpose.msra.mxu0 0
      %1228 = vmatprep.subr.bf16.mxu0 0
      %1229 = vmatpush1.bf16.xpose.msra.mxu0 %v1212
      %1230 = vmatprep.subr.bf16.mxu0 0
      %1231 = vmatpush2.bf16.xpose.msra.mxu0 0
      %1232 = vmatprep.subr.bf16.mxu0 0
      %1233 = vmatpush2.bf16.xpose.msra.mxu0 0
      %1234 = vmatprep.subr.bf16.mxu0 0
      %1235 = vmatpush2.bf16.xpose.msra.mxu0 0
      %1236 = vmatprep.subr.bf16.mxu0 0
      %1237 = vmatpush2.bf16.xpose.msra.mxu0 0
      %1238 = vmatprep.subr.bf16.mxu0 0
      %1239 = vmatpush2.bf16.xpose.msra.mxu0 0
      %1240 = vmatprep.subr.bf16.mxu0 0
      %1241 = vmatpush2.bf16.xpose.msra.mxu0 0
      %1242 = vmatprep.subr.bf16.mxu0 0
      %1243 = vmatpush2.bf16.xpose.msra.mxu0 0
      %1244 = vmatprep.subr.bf16.mxu0 0
      %1245 = vmatpush2.bf16.xpose.msra.mxu0 0
      %1246 = vmatprep.mubr.bf16.mxu0 0
      %1247 = vmatmul.mubr.bf16.gmra.mxu0 %v1209
      %v1248 = vpop.f32.mrf.mxu0
      %v1249 = vadd.f32 0.0, %v1248
      %v1250 = vpop.f32.mrf.mxu0
      %v1251 = vpop.f32.mrf.mxu0
      %v1252 = vpop.f32.mrf.mxu0
      %1253 = vdwg.mxu0
      %v1255 = vsel %vm1161, %v1155, 0
      %v1258 = vsel %vm1161, %v1159, 0
      %1260 = vmatprep.subr.bf16.mxu0 0
      %1261 = vmatpush1.bf16.xpose.msra.mxu0 0
      %1262 = vmatprep.subr.bf16.mxu0 0
      %1263 = vmatpush1.bf16.xpose.msra.mxu0 0
      %1264 = vmatprep.subr.bf16.mxu0 0
      %1265 = vmatpush1.bf16.xpose.msra.mxu0 0
      %1266 = vmatprep.subr.bf16.mxu0 0
      %1267 = vmatpush1.bf16.xpose.msra.mxu0 0
      %1268 = vmatprep.subr.bf16.mxu0 0
      %1269 = vmatpush1.bf16.xpose.msra.mxu0 0
      %1270 = vmatprep.subr.bf16.mxu0 0
      %1271 = vmatpush1.bf16.xpose.msra.mxu0 0
      %1272 = vmatprep.subr.bf16.mxu0 0
      %1273 = vmatpush1.bf16.xpose.msra.mxu0 0
      %1274 = vmatprep.subr.bf16.mxu0 0
      %1275 = vmatpush1.bf16.xpose.msra.mxu0 %v1258
      %1276 = vmatprep.subr.bf16.mxu0 0
      %1277 = vmatpush2.bf16.xpose.msra.mxu0 0
      %1278 = vmatprep.subr.bf16.mxu0 0
      %1279 = vmatpush2.bf16.xpose.msra.mxu0 0
      %1280 = vmatprep.subr.bf16.mxu0 0
      %1281 = vmatpush2.bf16.xpose.msra.mxu0 0
      %1282 = vmatprep.subr.bf16.mxu0 0
      %1283 = vmatpush2.bf16.xpose.msra.mxu0 0
      %1284 = vmatprep.subr.bf16.mxu0 0
      %1285 = vmatpush2.bf16.xpose.msra.mxu0 0
      %1286 = vmatprep.subr.bf16.mxu0 0
      %1287 = vmatpush2.bf16.xpose.msra.mxu0 0
      %1288 = vmatprep.subr.bf16.mxu0 0
      %1289 = vmatpush2.bf16.xpose.msra.mxu0 0
      %1290 = vmatprep.subr.bf16.mxu0 0
      %1291 = vmatpush2.bf16.xpose.msra.mxu0 0
      %1292 = vmatprep.mubr.bf16.mxu0 0
      %1293 = vmatmul.mubr.bf16.gmra.mxu0 %v1255
      %v1294 = vpop.f32.mrf.mxu0
      %v1295 = vadd.f32 0.0, %v1294
      %v1296 = vpop.f32.mrf.mxu0
      %v1297 = vpop.f32.mrf.mxu0
      %v1298 = vpop.f32.mrf.mxu0
      %1299 = vdwg.mxu0
      %v1301 = vsel %vm1161, %v1156, 0
      %v1304 = vsel %vm1161, %v1160, 0
      %1306 = vmatprep.subr.bf16.mxu0 0
      %1307 = vmatpush1.bf16.xpose.msra.mxu0 0
      %1308 = vmatprep.subr.bf16.mxu0 0
      %1309 = vmatpush1.bf16.xpose.msra.mxu0 0
      %1310 = vmatprep.subr.bf16.mxu0 0
      %1311 = vmatpush1.bf16.xpose.msra.mxu0 0
      %1312 = vmatprep.subr.bf16.mxu0 0
      %1313 = vmatpush1.bf16.xpose.msra.mxu0 0
      %1314 = vmatprep.subr.bf16.mxu0 0
      %1315 = vmatpush1.bf16.xpose.msra.mxu0 0
      %1316 = vmatprep.subr.bf16.mxu0 0
      %1317 = vmatpush1.bf16.xpose.msra.mxu0 0
      %1318 = vmatprep.subr.bf16.mxu0 0
      %1319 = vmatpush1.bf16.xpose.msra.mxu0 0
      %1320 = vmatprep.subr.bf16.mxu0 0
      %1321 = vmatpush1.bf16.xpose.msra.mxu0 %v1304
      %1322 = vmatprep.subr.bf16.mxu0 0
      %1323 = vmatpush2.bf16.xpose.msra.mxu0 0
      %1324 = vmatprep.subr.bf16.mxu0 0
      %1325 = vmatpush2.bf16.xpose.msra.mxu0 0
      %1326 = vmatprep.subr.bf16.mxu0 0
      %1327 = vmatpush2.bf16.xpose.msra.mxu0 0
      %1328 = vmatprep.subr.bf16.mxu0 0
      %1329 = vmatpush2.bf16.xpose.msra.mxu0 0
      %1330 = vmatprep.subr.bf16.mxu0 0
      %1331 = vmatpush2.bf16.xpose.msra.mxu0 0
      %1332 = vmatprep.subr.bf16.mxu0 0
      %1333 = vmatpush2.bf16.xpose.msra.mxu0 0
      %1334 = vmatprep.subr.bf16.mxu0 0
      %1335 = vmatpush2.bf16.xpose.msra.mxu0 0
      %1336 = vmatprep.subr.bf16.mxu0 0
      %1337 = vmatpush2.bf16.xpose.msra.mxu0 0
      %1338 = vmatprep.mubr.bf16.mxu0 0
      %1339 = vmatmul.mubr.bf16.gmra.mxu0 %v1301
      %v1340 = vpop.f32.mrf.mxu0
      %v1341 = vadd.f32 0.0, %v1340
      %v1342 = vpop.f32.mrf.mxu0
      %v1343 = vpop.f32.mrf.mxu0
      %v1344 = vpop.f32.mrf.mxu0
      %1345 = vdwg.mxu0
      %vm1346 = vcmask 64512
      %v1347 = vsel %vm1346, %v1203, -inf
      %1348 = vmax.xlane.f32.xlu0 %v1347
      %v1349 = vpop.xlane.xlu0 %1348
      %v1350 = vsel %vm1346, %v1249, -inf
      %1351 = vmax.xlane.f32.xlu0 %v1350
      %v1352 = vpop.xlane.xlu0 %1351
      %v1353 = vsel %vm1346, %v1295, -inf
      %1354 = vmax.xlane.f32.xlu0 %v1353
      %v1355 = vpop.xlane.xlu0 %1354
      %v1356 = vsel %vm1346, %v1341, -inf
      %1357 = vmax.xlane.f32.xlu0 %v1356
      %v1358 = vpop.xlane.xlu0 %1357
      %v1359 = vsub.f32 %v1203, %v1349
      %v1360 = vsub.f32 %v1249, %v1352
      %v1361 = vsub.f32 %v1295, %v1355
      %v1362 = vsub.f32 %v1341, %v1358
      %v1363 = vmul.f32 %v1359, 1.442695
      %v1364 = vpow.pop %v1363
      %v1365 = vmul.f32 %v1360, 1.442695
      %v1366 = vpow.pop %v1365
      %v1367 = vmul.f32 %v1361, 1.442695
      %v1368 = vpow.pop %v1367
      %v1369 = vmul.f32 %v1362, 1.442695
      %v1370 = vpow.pop %v1369
      %v1371 = vsel %vm1346, %v1364, 0.0
      %1372 = vadd.xlane.f32.xlu0 %v1371
      %v1373 = vpop.xlane.xlu0 %1372
      %v1374 = vsel %vm1346, %v1366, 0.0
      %1375 = vadd.xlane.f32.xlu0 %v1374
      %v1376 = vpop.xlane.xlu0 %1375
      %v1377 = vsel %vm1346, %v1368, 0.0
      %1378 = vadd.xlane.f32.xlu0 %v1377
      %v1379 = vpop.xlane.xlu0 %1378
      %v1380 = vsel %vm1346, %v1370, 0.0
      %1381 = vadd.xlane.f32.xlu0 %v1380
      %v1382 = vpop.xlane.xlu0 %1381
      %v1383 = vpack.c.bf16 %v1364, %v1364
      %v1384 = vpack.c.bf16 %v1366, %v1366
      %v1385 = vpack.c.bf16 %v1368, %v1368
      %v1386 = vpack.c.bf16 %v1370, %v1370
      %v1387 = vpack.c.bf16 %v940, %v940
      %v1388 = vpack.c.bf16 %v1010, %v1010
      %v1389 = vpack.c.bf16 %v1080, %v1080
      %v1390 = vpack.c.bf16 %v1150, %v1150
      %v1392 = vsel %vm1346, %v1383, 0
      %vm1394 = vcmask 1043456
      %v1396 = vsel %vm1394, %v1387, 0
      %1398 = vmatprep.subr.bf16.mxu0 0
      %1399 = vmatpush1.bf16.msra.mxu0 0
      %1400 = vmatprep.subr.bf16.mxu0 0
      %1401 = vmatpush1.bf16.msra.mxu0 0
      %1402 = vmatprep.subr.bf16.mxu0 0
      %1403 = vmatpush1.bf16.msra.mxu0 0
      %1404 = vmatprep.subr.bf16.mxu0 0
      %1405 = vmatpush1.bf16.msra.mxu0 0
      %1406 = vmatprep.subr.bf16.mxu0 0
      %1407 = vmatpush1.bf16.msra.mxu0 0
      %1408 = vmatprep.subr.bf16.mxu0 0
      %1409 = vmatpush1.bf16.msra.mxu0 0
      %1410 = vmatprep.subr.bf16.mxu0 0
      %1411 = vmatpush1.bf16.msra.mxu0 0
      %1412 = vmatprep.subr.bf16.mxu0 0
      %1413 = vmatpush1.bf16.msra.mxu0 %v1396
      %1414 = vmatprep.subr.bf16.mxu0 0
      %1415 = vmatpush2.bf16.msra.mxu0 0
      %1416 = vmatprep.subr.bf16.mxu0 0
      %1417 = vmatpush2.bf16.msra.mxu0 0
      %1418 = vmatprep.subr.bf16.mxu0 0
      %1419 = vmatpush2.bf16.msra.mxu0 0
      %1420 = vmatprep.subr.bf16.mxu0 0
      %1421 = vmatpush2.bf16.msra.mxu0 0
      %1422 = vmatprep.subr.bf16.mxu0 0
      %1423 = vmatpush2.bf16.msra.mxu0 0
      %1424 = vmatprep.subr.bf16.mxu0 0
      %1425 = vmatpush2.bf16.msra.mxu0 0
      %1426 = vmatprep.subr.bf16.mxu0 0
      %1427 = vmatpush2.bf16.msra.mxu0 0
      %1428 = vmatprep.subr.bf16.mxu0 0
      %1429 = vmatpush2.bf16.msra.mxu0 0
      %1430 = vmatprep.mubr.bf16.mxu0 0
      %1431 = vmatmul.mubr.bf16.gmra.mxu0 %v1392
      %v1432 = vpop.f32.mrf.mxu0
      %v1433 = vadd.f32 0.0, %v1432
      %v1434 = vpop.f32.mrf.mxu0
      %v1435 = vpop.f32.mrf.mxu0
      %v1436 = vpop.f32.mrf.mxu0
      %1437 = vdwg.mxu0
      %v1439 = vsel %vm1346, %v1384, 0
      %v1442 = vsel %vm1394, %v1388, 0
      %1444 = vmatprep.subr.bf16.mxu0 0
      %1445 = vmatpush1.bf16.msra.mxu0 0
      %1446 = vmatprep.subr.bf16.mxu0 0
      %1447 = vmatpush1.bf16.msra.mxu0 0
      %1448 = vmatprep.subr.bf16.mxu0 0
      %1449 = vmatpush1.bf16.msra.mxu0 0
      %1450 = vmatprep.subr.bf16.mxu0 0
      %1451 = vmatpush1.bf16.msra.mxu0 0
      %1452 = vmatprep.subr.bf16.mxu0 0
      %1453 = vmatpush1.bf16.msra.mxu0 0
      %1454 = vmatprep.subr.bf16.mxu0 0
      %1455 = vmatpush1.bf16.msra.mxu0 0
      %1456 = vmatprep.subr.bf16.mxu0 0
      %1457 = vmatpush1.bf16.msra.mxu0 0
      %1458 = vmatprep.subr.bf16.mxu0 0
      %1459 = vmatpush1.bf16.msra.mxu0 %v1442
      %1460 = vmatprep.subr.bf16.mxu0 0
      %1461 = vmatpush2.bf16.msra.mxu0 0
      %1462 = vmatprep.subr.bf16.mxu0 0
      %1463 = vmatpush2.bf16.msra.mxu0 0
      %1464 = vmatprep.subr.bf16.mxu0 0
      %1465 = vmatpush2.bf16.msra.mxu0 0
      %1466 = vmatprep.subr.bf16.mxu0 0
      %1467 = vmatpush2.bf16.msra.mxu0 0
      %1468 = vmatprep.subr.bf16.mxu0 0
      %1469 = vmatpush2.bf16.msra.mxu0 0
      %1470 = vmatprep.subr.bf16.mxu0 0
      %1471 = vmatpush2.bf16.msra.mxu0 0
      %1472 = vmatprep.subr.bf16.mxu0 0
      %1473 = vmatpush2.bf16.msra.mxu0 0
      %1474 = vmatprep.subr.bf16.mxu0 0
      %1475 = vmatpush2.bf16.msra.mxu0 0
      %1476 = vmatprep.mubr.bf16.mxu0 0
      %1477 = vmatmul.mubr.bf16.gmra.mxu0 %v1439
      %v1478 = vpop.f32.mrf.mxu0
      %v1479 = vadd.f32 0.0, %v1478
      %v1480 = vpop.f32.mrf.mxu0
      %v1481 = vpop.f32.mrf.mxu0
      %v1482 = vpop.f32.mrf.mxu0
      %1483 = vdwg.mxu0
      %v1485 = vsel %vm1346, %v1385, 0
      %v1488 = vsel %vm1394, %v1389, 0
      %1490 = vmatprep.subr.bf16.mxu0 0
      %1491 = vmatpush1.bf16.msra.mxu0 0
      %1492 = vmatprep.subr.bf16.mxu0 0
      %1493 = vmatpush1.bf16.msra.mxu0 0
      %1494 = vmatprep.subr.bf16.mxu0 0
      %1495 = vmatpush1.bf16.msra.mxu0 0
      %1496 = vmatprep.subr.bf16.mxu0 0
      %1497 = vmatpush1.bf16.msra.mxu0 0
      %1498 = vmatprep.subr.bf16.mxu0 0
      %1499 = vmatpush1.bf16.msra.mxu0 0
      %1500 = vmatprep.subr.bf16.mxu0 0
      %1501 = vmatpush1.bf16.msra.mxu0 0
      %1502 = vmatprep.subr.bf16.mxu0 0
      %1503 = vmatpush1.bf16.msra.mxu0 0
      %1504 = vmatprep.subr.bf16.mxu0 0
      %1505 = vmatpush1.bf16.msra.mxu0 %v1488
      %1506 = vmatprep.subr.bf16.mxu0 0
      %1507 = vmatpush2.bf16.msra.mxu0 0
      %1508 = vmatprep.subr.bf16.mxu0 0
      %1509 = vmatpush2.bf16.msra.mxu0 0
      %1510 = vmatprep.subr.bf16.mxu0 0
      %1511 = vmatpush2.bf16.msra.mxu0 0
      %1512 = vmatprep.subr.bf16.mxu0 0
      %1513 = vmatpush2.bf16.msra.mxu0 0
      %1514 = vmatprep.subr.bf16.mxu0 0
      %1515 = vmatpush2.bf16.msra.mxu0 0
      %1516 = vmatprep.subr.bf16.mxu0 0
      %1517 = vmatpush2.bf16.msra.mxu0 0
      %1518 = vmatprep.subr.bf16.mxu0 0
      %1519 = vmatpush2.bf16.msra.mxu0 0
      %1520 = vmatprep.subr.bf16.mxu0 0
      %1521 = vmatpush2.bf16.msra.mxu0 0
      %1522 = vmatprep.mubr.bf16.mxu0 0
      %1523 = vmatmul.mubr.bf16.gmra.mxu0 %v1485
      %v1524 = vpop.f32.mrf.mxu0
      %v1525 = vadd.f32 0.0, %v1524
      %v1526 = vpop.f32.mrf.mxu0
      %v1527 = vpop.f32.mrf.mxu0
      %v1528 = vpop.f32.mrf.mxu0
      %1529 = vdwg.mxu0
      %v1531 = vsel %vm1346, %v1386, 0
      %v1534 = vsel %vm1394, %v1390, 0
      %1536 = vmatprep.subr.bf16.mxu0 0
      %1537 = vmatpush1.bf16.msra.mxu0 0
      %1538 = vmatprep.subr.bf16.mxu0 0
      %1539 = vmatpush1.bf16.msra.mxu0 0
      %1540 = vmatprep.subr.bf16.mxu0 0
      %1541 = vmatpush1.bf16.msra.mxu0 0
      %1542 = vmatprep.subr.bf16.mxu0 0
      %1543 = vmatpush1.bf16.msra.mxu0 0
      %1544 = vmatprep.subr.bf16.mxu0 0
      %1545 = vmatpush1.bf16.msra.mxu0 0
      %1546 = vmatprep.subr.bf16.mxu0 0
      %1547 = vmatpush1.bf16.msra.mxu0 0
      %1548 = vmatprep.subr.bf16.mxu0 0
      %1549 = vmatpush1.bf16.msra.mxu0 0
      %1550 = vmatprep.subr.bf16.mxu0 0
      %1551 = vmatpush1.bf16.msra.mxu0 %v1534
      %1552 = vmatprep.subr.bf16.mxu0 0
      %1553 = vmatpush2.bf16.msra.mxu0 0
      %1554 = vmatprep.subr.bf16.mxu0 0
      %1555 = vmatpush2.bf16.msra.mxu0 0
      %1556 = vmatprep.subr.bf16.mxu0 0
      %1557 = vmatpush2.bf16.msra.mxu0 0
      %1558 = vmatprep.subr.bf16.mxu0 0
      %1559 = vmatpush2.bf16.msra.mxu0 0
      %1560 = vmatprep.subr.bf16.mxu0 0
      %1561 = vmatpush2.bf16.msra.mxu0 0
      %1562 = vmatprep.subr.bf16.mxu0 0
      %1563 = vmatpush2.bf16.msra.mxu0 0
      %1564 = vmatprep.subr.bf16.mxu0 0
      %1565 = vmatpush2.bf16.msra.mxu0 0
      %1566 = vmatprep.subr.bf16.mxu0 0
      %1567 = vmatpush2.bf16.msra.mxu0 0
      %1568 = vmatprep.mubr.bf16.mxu0 0
      %1569 = vmatmul.mubr.bf16.gmra.mxu0 %v1531
      %v1570 = vpop.f32.mrf.mxu0
      %v1571 = vadd.f32 0.0, %v1570
      %v1572 = vpop.f32.mrf.mxu0
      %v1573 = vpop.f32.mrf.mxu0
      %v1574 = vpop.f32.mrf.mxu0
      %1575 = vdwg.mxu0
      %v1576 = vrcp.pop %v1373
      %v1577 = vrcp.pop %v1376
      %v1578 = vrcp.pop %v1379
      %v1579 = vrcp.pop %v1382
      %v1580 = vmul.f32 %v1433, %v1576
      %v1581 = vmul.f32 %v1479, %v1577
      %v1582 = vmul.f32 %v1525, %v1578
      %v1583 = vmul.f32 %v1571, %v1579
      %v1584 = vpack.c.bf16 %v1580, %v1580
      %v1585 = vpack.c.bf16 %v1581, %v1581
      %v1586 = vpack.c.bf16 %v1582, %v1582
      %v1587 = vpack.c.bf16 %v1583, %v1583
      %vm1588 = vcmask 27648
      %1589 = vst.msk [vmem:[%s248] sm:$0xf] %vm1588, %v1584
      %1590 = vst.msk [vmem:[%s248 + $0x4] sm:$0xf] %vm1588, %v1585
      %1591 = vst.msk [vmem:[%s248 + $0x8] sm:$0xf] %vm1588, %v1586
      %1592 = vst.msk [vmem:[%s248 + $0xc] sm:$0xf] %vm1588, %v1587
      %p1593 = scmp.lt.s32.totalorder %s17, 1
      %s1594 = scalar_select %p1593, %s17, 1
      %s1595 = smul.addr %s1594, 4
      %s1596 = smul.addr %s1595, 4
      %s1597 = scalar_lea.vmem %s6, %s1596
      // Predicated region
      $region45: #{tpu_custom_call.1} parent=43 // pred_check
        %p1598 = pneg %p166
      $region46: #{tpu_custom_call.1} parent=43 // pred_check_branch
        %1600 = sbr.rel (%p1598) target = $region48
      $region47: #{tpu_custom_call.1} parent=43 // pred_region
        _
      $region48: #{tpu_custom_call.1} parent=43 // pred_fallthru
        _
    $region44: #{tpu_custom_call.1} parent=5 // pred_fallthru
      _
    %p1601 = scmp.le.s32.totalorder 2, %s12
    // Predicated region
    $region49: #{tpu_custom_call.1} parent=5 // pred_check
      %p1602 = pneg %p1601
    $region50: #{tpu_custom_call.1} parent=5 // pred_check_branch
      %1604 = sbr.rel (%p1602) target = $region52
    $region51: #{tpu_custom_call.1} parent=5 // pred_region
      %s1605 = ssub.s32 %s12, 2
      // Predicated region
      $region53: #{tpu_custom_call.1} parent=51 // pred_check
        %p1606 = pneg %p172
      $region54: #{tpu_custom_call.1} parent=51 // pred_check_branch
        %1608 = sbr.rel (%p1606) target = $region56
      $region55: #{tpu_custom_call.1} parent=51 // pred_region
        %p1609 = scmp.lt.s32.totalorder %s18, 1
        %s1610 = scalar_select %p1609, %s18, 1
        %s1611 = smul.addr %s1610, 4
        %s1612 = smul.addr %s1611, 4
        %s1613 = scalar_lea.vmem %s6, %s1612
      $region56: #{tpu_custom_call.1} parent=51 // pred_fallthru
        _
    $region52: #{tpu_custom_call.1} parent=5 // pred_fallthru
      _
  $region6: #{tpu_custom_call.1} parent=0 // loop_footer
    %s16 = sadd.s32 1, %s12
  $region7: #{tpu_custom_call.1} parent=0 // loop_footer_branch
    %11 = sbr.rel target = $region3
  $region8: #{tpu_custom_call.1} parent=0 // loop_exit
    _

</llo_original>
